<compile_context>
chip_gen: v5e
topology: v5e:2x2
jax: 0.10.0
libtpu: 0.0.40
codegen_flags: <defaults>
</compile_context>

<pallas_src>
import jax
import jax.numpy as jnp
from jax import lax
from jax.experimental import pallas as pl
from jax.experimental.pallas import tpu as pltpu


# ----------------------------------------------------------------------------
# Kernel 1: single-layer GRU over the question sequence, returns last hidden.
# PyTorch gate order is [r, z, n].
# ----------------------------------------------------------------------------
def gru_kernel(x_ref, wih_ref, whh_ref, bih_ref, bhh_ref, hout_ref, gi_ref):
    # x_ref: (T*B, E) time-major flattened; gi_ref: (T*B, 3H) VMEM scratch.
    TB, _ = x_ref.shape
    B, H = hout_ref.shape
    T = TB // B

    # Hoisted input projection: ONE big matmul instead of T tiny ones on the
    # serial critical path.
    gi_ref[...] = (jnp.dot(x_ref[...], wih_ref[...],
                           preferred_element_type=jnp.float32) + bih_ref[...])

    whh = whh_ref[...]
    bhh = bhh_ref[...]
    h = jnp.zeros((B, H), jnp.float32)
    # T is a static Python int -> this fully unrolls the recurrence so the
    # scheduler can interleave MXU pushes with VPU sigmoid/tanh across steps.
    for t in range(T):
        gi = gi_ref[t * B:(t + 1) * B, :]                              # (B, 3H)
        gh = jnp.dot(h, whh, preferred_element_type=jnp.float32) + bhh
        r = jax.nn.sigmoid(gi[:, 0:H] + gh[:, 0:H])
        z = jax.nn.sigmoid(gi[:, H:2 * H] + gh[:, H:2 * H])
        n = jnp.tanh(gi[:, 2 * H:3 * H] + r * gh[:, 2 * H:3 * H])
        h = (1.0 - z) * n + z * h
    hout_ref[...] = h


def run_gru(x_flat, w_ih_t, w_hh_t, b_ih, b_hh, batch):
    # x_flat: (T*B, E), row = t*B + b (time-major).
    TB, _ = x_flat.shape
    H = w_hh_t.shape[0]
    vmem = pl.BlockSpec(memory_space=pltpu.MemorySpace.VMEM)
    # TODO(synk): on v7x (2 TCs) split the batch across a leading 'parallel'
    # grid axis; at B=2 a gridless single-core call is fine.
    return pl.pallas_call(
        gru_kernel,
        out_shape=jax.ShapeDtypeStruct((batch, H), jnp.float32),
        in_specs=[vmem] * 5,
        out_specs=vmem,
        scratch_shapes=[pltpu.VMEM((TB, 3 * H), jnp.float32)],
    )(x_flat, w_ih_t, w_hh_t, b_ih, b_hh)


# ----------------------------------------------------------------------------
# Kernel 2: fused per-batch-element pipeline:
#   p=-1 normalize over regions -> relu(gth_iatt) -> att logits -> softmax
#   -> attention-weighted pooling fused with gth_i -> relu(gth_q)*relu(gth_i)
#   -> relu(gth_clf) -> clf logits
# ----------------------------------------------------------------------------
def fused_attention_clf_kernel(
        img_ref, qenc_ref,
        w1i_ref, w1q_ref, b1_ref,
        watt_ref, batt_ref,
        wq_ref, bq_ref,
        wi_ref, bi_ref,
        wc_ref, bc_ref,
        wclf_ref, bclf_ref,
        out_ref):
    img = img_ref[0].astype(jnp.float32)      # (R, F), image arrives in bf16
    qenc = qenc_ref[0]                        # (1, H), float32

    # F.normalize(image, p=-1, dim=1) over the region axis:
    #   norm = 1 / sum_r 1/|x|;  out = x / max(norm, 1e-12)
    #        == x * min(sum_r 1/|x|, 1e12)      (single multiply, no 2nd divide)
    inv_abs = pl.reciprocal(jnp.abs(img), approx=True)
    inv_sum = jnp.sum(inv_abs, axis=0, keepdims=True)                 # (1, F)
    img_n = img * jnp.minimum(inv_sum, 1e12)                          # (R, F)
    img_n_bf = img_n.astype(jnp.bfloat16)     # reused by both 2048-wide matmuls

    # relu(gth_iatt(cat(img_n, qenc_tiled))) as a split matmul (bf16 MXU path).
    pre = (jnp.dot(img_n_bf, w1i_ref[...], preferred_element_type=jnp.float32)
           + jnp.dot(qenc, w1q_ref[...], preferred_element_type=jnp.float32)
           + b1_ref[...])
    gated = jnp.maximum(pre, 0.0)                                     # (R, H)

    # Attention logits + softmax over the 36 regions.
    scores = (jnp.dot(gated, watt_ref[...],
                      preferred_element_type=jnp.float32) + batt_ref[...])  # (R,1)
    m = jnp.max(scores, axis=0, keepdims=True)
    e = jnp.exp(scores - m)
    a = e / jnp.sum(e, axis=0, keepdims=True)                         # (R, 1)

    # Attention pooling fused into gth_i (mathematically identical):
    #   relu((a^T @ img_n) @ W_i + b) == relu(a^T @ (img_n @ W_i) + b)
    # The 2048-wide contraction becomes an MXU matmul; the weighted sum is a
    # tiny (R, H) reduce instead of an (R, F) broadcast-multiply + reduce.
    iw = jnp.dot(img_n_bf, wi_ref[...], preferred_element_type=jnp.float32)  # (R,H)
    v = jnp.maximum(jnp.sum(a * iw, axis=0, keepdims=True) + bi_ref[...], 0.0)

    q = jnp.maximum(jnp.dot(qenc, wq_ref[...],
                            preferred_element_type=jnp.float32) + bq_ref[...], 0.0)
    h = q * v
    hc = jnp.maximum(jnp.dot(h, wc_ref[...],
                             preferred_element_type=jnp.float32) + bc_ref[...], 0.0)
    out_ref[0] = (jnp.dot(hc, wclf_ref[...],
                          preferred_element_type=jnp.float32) + bclf_ref[...])


def run_fused(image_bf16, qenc_b1h, params):
    B, R, F = image_bf16.shape
    H = qenc_b1h.shape[-1]
    C = params["w_clf"].shape[1]

    # Weights that dominate HBM traffic / matmul FLOPs go in as bf16.
    w1i_bf = params["w1_img"].astype(jnp.bfloat16)
    wi_bf = params["w_i"].astype(jnp.bfloat16)

    def full(shape):
        return pl.BlockSpec(shape, lambda b: tuple(0 for _ in shape))

    in_specs = [
        pl.BlockSpec((1, R, F), lambda b: (b, 0, 0)),     # image (bf16)
        pl.BlockSpec((1, 1, H), lambda b: (b, 0, 0)),     # qenc
        full((F, H)), full((H, H)), full((1, H)),         # gth_iatt (split) + bias
        full((H, 1)), full((1, 1)),                       # att
        full((H, H)), full((1, H)),                       # gth_q
        full((F, H)), full((1, H)),                       # gth_i
        full((H, H)), full((1, H)),                       # gth_clf
        full((H, C)), full((1, C)),                       # clf
    ]
    out = pl.pallas_call(
        fused_attention_clf_kernel,
        out_shape=jax.ShapeDtypeStruct((B, 1, C), jnp.float32),
        grid=(B,),
        in_specs=in_specs,
        out_specs=pl.BlockSpec((1, 1, C), lambda b: (b, 0, 0)),
        compiler_params=pltpu.CompilerParams(dimension_semantics=("parallel",)),
    )(image_bf16, qenc_b1h,
      w1i_bf, params["w1_q"], params["b1"],
      params["w_att"], params["b_att"],
      params["w_q"], params["b_q"],
      wi_bf, params["b_i"],
      params["w_c"], params["b_c"],
      params["w_clf"], params["b_clf"])
    return out.reshape(B, C)


# ----------------------------------------------------------------------------
# Wrapper (glue: embedding gather, permute/flatten, parameter plumbing)
# ----------------------------------------------------------------------------
def model_forward(image, question, params):
    B, T = question.shape
    emb = jnp.take(params["wembed"], question, axis=0)                 # (B, T, E)
    E = emb.shape[-1]
    # Time-major, flattened to (T*B, E) so the GRU input projection is one matmul.
    x_flat = jnp.transpose(emb, (1, 0, 2)).reshape(T * B, E).astype(jnp.float32)
    qenc = run_gru(x_flat,
                   params["gru_w_ih_t"], params["gru_w_hh_t"],
                   params["gru_b_ih"], params["gru_b_hh"], B)          # (B, H)
    H = qenc.shape[-1]
    s_head = run_fused(image.astype(jnp.bfloat16),
                       qenc.reshape(B, 1, H), params)                  # (B, C)
    # Dropout(0.5) -> identity at inference.
    return s_head


def init_params(key, vocab_size, emb_dim, hid_dim, num_classes, img_feat=2048):
    ks = iter(jax.random.split(key, 32))

    def dense(din, dout, scale=0.05):
        w = scale * jax.random.normal(next(ks), (din, dout), jnp.float32)
        b = scale * jax.random.normal(next(ks), (1, dout), jnp.float32)
        return w, b

    params = {}
    params["wembed"] = 0.1 * jax.random.normal(
        next(ks), (vocab_size + 1, emb_dim), jnp.float32)

    s = 1.0 / jnp.sqrt(hid_dim)
    params["gru_w_ih_t"] = s * jax.random.normal(
        next(ks), (emb_dim, 3 * hid_dim), jnp.float32)
    params["gru_w_hh_t"] = s * jax.random.normal(
        next(ks), (hid_dim, 3 * hid_dim), jnp.float32)
    params["gru_b_ih"] = s * jax.random.normal(
        next(ks), (1, 3 * hid_dim), jnp.float32)
    params["gru_b_hh"] = s * jax.random.normal(
        next(ks), (1, 3 * hid_dim), jnp.float32)

    # gth_iatt over cat([image(2048), qenc(H)]) -> split weight, single bias.
    params["w1_img"], params["b1"] = dense(img_feat, hid_dim, scale=0.02)
    params["w1_q"], _ = dense(hid_dim, hid_dim, scale=0.02)
    params["w_att"], params["b_att"] = dense(hid_dim, 1, scale=0.05)
    params["w_q"], params["b_q"] = dense(hid_dim, hid_dim, scale=0.05)
    params["w_i"], params["b_i"] = dense(img_feat, hid_dim, scale=0.02)
    params["w_c"], params["b_c"] = dense(hid_dim, hid_dim, scale=0.05)
    params["w_clf"], params["b_clf"] = dense(hid_dim, num_classes, scale=0.05)
    return params


if __name__ == "__main__":
    # Small but module-consistent shapes: the forward hard-codes 36 regions and
    # 2048 image features; question length 14 per the docstring.
    vocab_size, emb_dim, hid_dim, num_classes = 50, 64, 128, 128
    B, T, R, F = 2, 14, 36, 2048

    key = jax.random.PRNGKey(0)
    k_img, k_q, k_p = jax.random.split(key, 3)
    image = jax.random.normal(k_img, (B, R, F), jnp.float32)
    question = jax.random.randint(k_q, (B, T), 0, vocab_size, dtype=jnp.int32)
    params = init_params(k_p, vocab_size, emb_dim, hid_dim, num_classes, F)

    out = model_forward(image, question, params)
    out = jax.block_until_ready(out)

    assert out.shape == (B, num_classes), out.shape
    assert bool(jnp.all(jnp.isfinite(out)))
    print("KERNEL_OK")
</pallas_src>

<mosaic_0001>
module attributes {stable_mosaic.version = 11 : i64} {
  func.func @gru_kernel(%arg0: memref<28x64xf32, #tpu.memory_space<vmem>>, %arg1: memref<64x384xf32, #tpu.memory_space<vmem>>, %arg2: memref<128x384xf32, #tpu.memory_space<vmem>>, %arg3: memref<1x384xf32, #tpu.memory_space<vmem>>, %arg4: memref<1x384xf32, #tpu.memory_space<vmem>>, %arg5: memref<2x128xf32, #tpu.memory_space<vmem>>, %arg6: memref<28x384xf32, #tpu.memory_space<vmem>>) attributes {dimension_semantics = [], scalar_prefetch = 0 : i64, scratch_operands = 1 : i64, tpu.core_type = #tpu.core_type<tc>} {
    %c0 = arith.constant 0 : index
    %c0_0 = arith.constant 0 : index
    %0 = vector.load %arg0[%c0, %c0_0] : memref<28x64xf32, #tpu.memory_space<vmem>>, vector<28x64xf32>
    %c0_1 = arith.constant 0 : index
    %c0_2 = arith.constant 0 : index
    %1 = vector.load %arg1[%c0_1, %c0_2] : memref<64x384xf32, #tpu.memory_space<vmem>>, vector<64x384xf32>
    %cst = arith.constant dense<0.000000e+00> : vector<28x384xf32>
    %2 = tpu.matmul %0, %1, %cst {dimension_numbers = #tpu.dot_dimension_numbers<[1], [0], [0], [1], [0, 0, 1, 1], [], []>} : vector<28x64xf32>, vector<64x384xf32>, vector<28x384xf32> -> vector<28x384xf32>
    %c0_3 = arith.constant 0 : index
    %c0_4 = arith.constant 0 : index
    %3 = vector.load %arg3[%c0_3, %c0_4] : memref<1x384xf32, #tpu.memory_space<vmem>>, vector<1x384xf32>
    %4 = vector.broadcast %3 : vector<1x384xf32> to vector<28x384xf32>
    %5 = arith.addf %2, %4 : vector<28x384xf32>
    %c0_5 = arith.constant 0 : index
    %c0_6 = arith.constant 0 : index
    %6 = vector.load %arg6[%c0_5, %c0_6] : memref<28x384xf32, #tpu.memory_space<vmem>>, vector<28x384xf32>
    tpu.vector_store %arg6[%c0_5, %c0_6], %5 {strides = array<i32>} : memref<28x384xf32, #tpu.memory_space<vmem>>, vector<28x384xf32>,
    %c0_7 = arith.constant 0 : index
    %c0_8 = arith.constant 0 : index
    %7 = vector.load %arg2[%c0_7, %c0_8] : memref<128x384xf32, #tpu.memory_space<vmem>>, vector<128x384xf32>
    %c0_9 = arith.constant 0 : index
    %c0_10 = arith.constant 0 : index
    %8 = vector.load %arg4[%c0_9, %c0_10] : memref<1x384xf32, #tpu.memory_space<vmem>>, vector<1x384xf32>
    %cst_11 = arith.constant 0.000000e+00 : f32
    %9 = vector.broadcast %cst_11 : f32 to vector<2x128xf32>
    %c0_12 = arith.constant 0 : index
    %c0_13 = arith.constant 0 : index
    %10 = vector.load %arg6[%c0_12, %c0_13] : memref<28x384xf32, #tpu.memory_space<vmem>>, vector<2x384xf32>
    %cst_14 = arith.constant dense<0.000000e+00> : vector<2x384xf32>
    %11 = tpu.matmul %9, %7, %cst_14 {dimension_numbers = #tpu.dot_dimension_numbers<[1], [0], [0], [1], [0, 0, 1, 1], [], []>} : vector<2x128xf32>, vector<128x384xf32>, vector<2x384xf32> -> vector<2x384xf32>
    %12 = vector.broadcast %8 : vector<1x384xf32> to vector<2x384xf32>
    %13 = arith.addf %11, %12 : vector<2x384xf32>
    %14 = vector.extract_strided_slice %10 {offsets = [0, 0], sizes = [2, 128], strides = [1, 1]} : vector<2x384xf32> to vector<2x128xf32>
    %15 = vector.extract_strided_slice %13 {offsets = [0, 0], sizes = [2, 128], strides = [1, 1]} : vector<2x384xf32> to vector<2x128xf32>
    %16 = arith.addf %14, %15 : vector<2x128xf32>
    %17 = arith.negf %16 : vector<2x128xf32>
    %18 = math.exp %17 : vector<2x128xf32>
    %cst_15 = arith.constant 1.000000e+00 : f32
    %19 = vector.broadcast %cst_15 : f32 to vector<2x128xf32>
    %20 = arith.addf %19, %18 : vector<2x128xf32>
    %21 = arith.divf %19, %20 : vector<2x128xf32>
    %22 = vector.extract_strided_slice %10 {offsets = [0, 128], sizes = [2, 128], strides = [1, 1]} : vector<2x384xf32> to vector<2x128xf32>
    %23 = vector.extract_strided_slice %13 {offsets = [0, 128], sizes = [2, 128], strides = [1, 1]} : vector<2x384xf32> to vector<2x128xf32>
    %24 = arith.addf %22, %23 : vector<2x128xf32>
    %25 = arith.negf %24 : vector<2x128xf32>
    %26 = math.exp %25 : vector<2x128xf32>
    %cst_16 = arith.constant 1.000000e+00 : f32
    %27 = vector.broadcast %cst_16 : f32 to vector<2x128xf32>
    %28 = arith.addf %27, %26 : vector<2x128xf32>
    %29 = arith.divf %27, %28 : vector<2x128xf32>
    %30 = vector.extract_strided_slice %10 {offsets = [0, 256], sizes = [2, 128], strides = [1, 1]} : vector<2x384xf32> to vector<2x128xf32>
    %31 = vector.extract_strided_slice %13 {offsets = [0, 256], sizes = [2, 128], strides = [1, 1]} : vector<2x384xf32> to vector<2x128xf32>
    %32 = arith.mulf %21, %31 : vector<2x128xf32>
    %33 = arith.addf %30, %32 : vector<2x128xf32>
    %34 = math.tanh %33 : vector<2x128xf32>
    %cst_17 = arith.constant 1.000000e+00 : f32
    %35 = vector.broadcast %cst_17 : f32 to vector<2x128xf32>
    %36 = arith.subf %35, %29 : vector<2x128xf32>
    %37 = arith.mulf %36, %34 : vector<2x128xf32>
    %38 = arith.mulf %29, %9 : vector<2x128xf32>
    %39 = arith.addf %37, %38 : vector<2x128xf32>
    %c2 = arith.constant 2 : index
    %c0_18 = arith.constant 0 : index
    %40 = vector.load %arg6[%c2, %c0_18] : memref<28x384xf32, #tpu.memory_space<vmem>>, vector<2x384xf32>
    %cst_19 = arith.constant dense<0.000000e+00> : vector<2x384xf32>
    %41 = tpu.matmul %39, %7, %cst_19 {dimension_numbers = #tpu.dot_dimension_numbers<[1], [0], [0], [1], [0, 0, 1, 1], [], []>} : vector<2x128xf32>, vector<128x384xf32>, vector<2x384xf32> -> vector<2x384xf32>
    %42 = vector.broadcast %8 : vector<1x384xf32> to vector<2x384xf32>
    %43 = arith.addf %41, %42 : vector<2x384xf32>
    %44 = vector.extract_strided_slice %40 {offsets = [0, 0], sizes = [2, 128], strides = [1, 1]} : vector<2x384xf32> to vector<2x128xf32>
    %45 = vector.extract_strided_slice %43 {offsets = [0, 0], sizes = [2, 128], strides = [1, 1]} : vector<2x384xf32> to vector<2x128xf32>
    %46 = arith.addf %44, %45 : vector<2x128xf32>
    %47 = arith.negf %46 : vector<2x128xf32>
    %48 = math.exp %47 : vector<2x128xf32>
    %cst_20 = arith.constant 1.000000e+00 : f32
    %49 = vector.broadcast %cst_20 : f32 to vector<2x128xf32>
    %50 = arith.addf %49, %48 : vector<2x128xf32>
    %51 = arith.divf %49, %50 : vector<2x128xf32>
    %52 = vector.extract_strided_slice %40 {offsets = [0, 128], sizes = [2, 128], strides = [1, 1]} : vector<2x384xf32> to vector<2x128xf32>
    %53 = vector.extract_strided_slice %43 {offsets = [0, 128], sizes = [2, 128], strides = [1, 1]} : vector<2x384xf32> to vector<2x128xf32>
    %54 = arith.addf %52, %53 : vector<2x128xf32>
    %55 = arith.negf %54 : vector<2x128xf32>
    %56 = math.exp %55 : vector<2x128xf32>
    %cst_21 = arith.constant 1.000000e+00 : f32
    %57 = vector.broadcast %cst_21 : f32 to vector<2x128xf32>
    %58 = arith.addf %57, %56 : vector<2x128xf32>
    %59 = arith.divf %57, %58 : vector<2x128xf32>
    %60 = vector.extract_strided_slice %40 {offsets = [0, 256], sizes = [2, 128], strides = [1, 1]} : vector<2x384xf32> to vector<2x128xf32>
    %61 = vector.extract_strided_slice %43 {offsets = [0, 256], sizes = [2, 128], strides = [1, 1]} : vector<2x384xf32> to vector<2x128xf32>
    %62 = arith.mulf %51, %61 : vector<2x128xf32>
    %63 = arith.addf %60, %62 : vector<2x128xf32>
    %64 = math.tanh %63 : vector<2x128xf32>
    %cst_22 = arith.constant 1.000000e+00 : f32
    %65 = vector.broadcast %cst_22 : f32 to vector<2x128xf32>
    %66 = arith.subf %65, %59 : vector<2x128xf32>
    %67 = arith.mulf %66, %64 : vector<2x128xf32>
    %68 = arith.mulf %59, %39 : vector<2x128xf32>
    %69 = arith.addf %67, %68 : vector<2x128xf32>
    %c4 = arith.constant 4 : index
    %c0_23 = arith.constant 0 : index
    %70 = vector.load %arg6[%c4, %c0_23] : memref<28x384xf32, #tpu.memory_space<vmem>>, vector<2x384xf32>
    %cst_24 = arith.constant dense<0.000000e+00> : vector<2x384xf32>
    %71 = tpu.matmul %69, %7, %cst_24 {dimension_numbers = #tpu.dot_dimension_numbers<[1], [0], [0], [1], [0, 0, 1, 1], [], []>} : vector<2x128xf32>, vector<128x384xf32>, vector<2x384xf32> -> vector<2x384xf32>
    %72 = vector.broadcast %8 : vector<1x384xf32> to vector<2x384xf32>
    %73 = arith.addf %71, %72 : vector<2x384xf32>
    %74 = vector.extract_strided_slice %70 {offsets = [0, 0], sizes = [2, 128], strides = [1, 1]} : vector<2x384xf32> to vector<2x128xf32>
    %75 = vector.extract_strided_slice %73 {offsets = [0, 0], sizes = [2, 128], strides = [1, 1]} : vector<2x384xf32> to vector<2x128xf32>
    %76 = arith.addf %74, %75 : vector<2x128xf32>
    %77 = arith.negf %76 : vector<2x128xf32>
    %78 = math.exp %77 : vector<2x128xf32>
    %cst_25 = arith.constant 1.000000e+00 : f32
    %79 = vector.broadcast %cst_25 : f32 to vector<2x128xf32>
    %80 = arith.addf %79, %78 : vector<2x128xf32>
    %81 = arith.divf %79, %80 : vector<2x128xf32>
    %82 = vector.extract_strided_slice %70 {offsets = [0, 128], sizes = [2, 128], strides = [1, 1]} : vector<2x384xf32> to vector<2x128xf32>
    %83 = vector.extract_strided_slice %73 {offsets = [0, 128], sizes = [2, 128], strides = [1, 1]} : vector<2x384xf32> to vector<2x128xf32>
    %84 = arith.addf %82, %83 : vector<2x128xf32>
    %85 = arith.negf %84 : vector<2x128xf32>
    %86 = math.exp %85 : vector<2x128xf32>
    %cst_26 = arith.constant 1.000000e+00 : f32
    %87 = vector.broadcast %cst_26 : f32 to vector<2x128xf32>
    %88 = arith.addf %87, %86 : vector<2x128xf32>
    %89 = arith.divf %87, %88 : vector<2x128xf32>
    %90 = vector.extract_strided_slice %70 {offsets = [0, 256], sizes = [2, 128], strides = [1, 1]} : vector<2x384xf32> to vector<2x128xf32>
    %91 = vector.extract_strided_slice %73 {offsets = [0, 256], sizes = [2, 128], strides = [1, 1]} : vector<2x384xf32> to vector<2x128xf32>
    %92 = arith.mulf %81, %91 : vector<2x128xf32>
    %93 = arith.addf %90, %92 : vector<2x128xf32>
    %94 = math.tanh %93 : vector<2x128xf32>
    %cst_27 = arith.constant 1.000000e+00 : f32
    %95 = vector.broadcast %cst_27 : f32 to vector<2x128xf32>
    %96 = arith.subf %95, %89 : vector<2x128xf32>
    %97 = arith.mulf %96, %94 : vector<2x128xf32>
    %98 = arith.mulf %89, %69 : vector<2x128xf32>
    %99 = arith.addf %97, %98 : vector<2x128xf32>
    %c6 = arith.constant 6 : index
    %c0_28 = arith.constant 0 : index
    %100 = vector.load %arg6[%c6, %c0_28] : memref<28x384xf32, #tpu.memory_space<vmem>>, vector<2x384xf32>
    %cst_29 = arith.constant dense<0.000000e+00> : vector<2x384xf32>
    %101 = tpu.matmul %99, %7, %cst_29 {dimension_numbers = #tpu.dot_dimension_numbers<[1], [0], [0], [1], [0, 0, 1, 1], [], []>} : vector<2x128xf32>, vector<128x384xf32>, vector<2x384xf32> -> vector<2x384xf32>
    %102 = vector.broadcast %8 : vector<1x384xf32> to vector<2x384xf32>
    %103 = arith.addf %101, %102 : vector<2x384xf32>
    %104 = vector.extract_strided_slice %100 {offsets = [0, 0], sizes = [2, 128], strides = [1, 1]} : vector<2x384xf32> to vector<2x128xf32>
    %105 = vector.extract_strided_slice %103 {offsets = [0, 0], sizes = [2, 128], strides = [1, 1]} : vector<2x384xf32> to vector<2x128xf32>
    %106 = arith.addf %104, %105 : vector<2x128xf32>
    %107 = arith.negf %106 : vector<2x128xf32>
    %108 = math.exp %107 : vector<2x128xf32>
    %cst_30 = arith.constant 1.000000e+00 : f32
    %109 = vector.broadcast %cst_30 : f32 to vector<2x128xf32>
    %110 = arith.addf %109, %108 : vector<2x128xf32>
    %111 = arith.divf %109, %110 : vector<2x128xf32>
    %112 = vector.extract_strided_slice %100 {offsets = [0, 128], sizes = [2, 128], strides = [1, 1]} : vector<2x384xf32> to vector<2x128xf32>
    %113 = vector.extract_strided_slice %103 {offsets = [0, 128], sizes = [2, 128], strides = [1, 1]} : vector<2x384xf32> to vector<2x128xf32>
    %114 = arith.addf %112, %113 : vector<2x128xf32>
    %115 = arith.negf %114 : vector<2x128xf32>
    %116 = math.exp %115 : vector<2x128xf32>
    %cst_31 = arith.constant 1.000000e+00 : f32
    %117 = vector.broadcast %cst_31 : f32 to vector<2x128xf32>
    %118 = arith.addf %117, %116 : vector<2x128xf32>
    %119 = arith.divf %117, %118 : vector<2x128xf32>
    %120 = vector.extract_strided_slice %100 {offsets = [0, 256], sizes = [2, 128], strides = [1, 1]} : vector<2x384xf32> to vector<2x128xf32>
    %121 = vector.extract_strided_slice %103 {offsets = [0, 256], sizes = [2, 128], strides = [1, 1]} : vector<2x384xf32> to vector<2x128xf32>
    %122 = arith.mulf %111, %121 : vector<2x128xf32>
    %123 = arith.addf %120, %122 : vector<2x128xf32>
    %124 = math.tanh %123 : vector<2x128xf32>
    %cst_32 = arith.constant 1.000000e+00 : f32
    %125 = vector.broadcast %cst_32 : f32 to vector<2x128xf32>
    %126 = arith.subf %125, %119 : vector<2x128xf32>
    %127 = arith.mulf %126, %124 : vector<2x128xf32>
    %128 = arith.mulf %119, %99 : vector<2x128xf32>
    %129 = arith.addf %127, %128 : vector<2x128xf32>
    %c8 = arith.constant 8 : index
    %c0_33 = arith.constant 0 : index
    %130 = vector.load %arg6[%c8, %c0_33] : memref<28x384xf32, #tpu.memory_space<vmem>>, vector<2x384xf32>
    %cst_34 = arith.constant dense<0.000000e+00> : vector<2x384xf32>
    %131 = tpu.matmul %129, %7, %cst_34 {dimension_numbers = #tpu.dot_dimension_numbers<[1], [0], [0], [1], [0, 0, 1, 1], [], []>} : vector<2x128xf32>, vector<128x384xf32>, vector<2x384xf32> -> vector<2x384xf32>
    %132 = vector.broadcast %8 : vector<1x384xf32> to vector<2x384xf32>
    %133 = arith.addf %131, %132 : vector<2x384xf32>
    %134 = vector.extract_strided_slice %130 {offsets = [0, 0], sizes = [2, 128], strides = [1, 1]} : vector<2x384xf32> to vector<2x128xf32>
    %135 = vector.extract_strided_slice %133 {offsets = [0, 0], sizes = [2, 128], strides = [1, 1]} : vector<2x384xf32> to vector<2x128xf32>
    %136 = arith.addf %134, %135 : vector<2x128xf32>
    %137 = arith.negf %136 : vector<2x128xf32>
    %138 = math.exp %137 : vector<2x128xf32>
    %cst_35 = arith.constant 1.000000e+00 : f32
    %139 = vector.broadcast %cst_35 : f32 to vector<2x128xf32>
    %140 = arith.addf %139, %138 : vector<2x128xf32>
    %141 = arith.divf %139, %140 : vector<2x128xf32>
    %142 = vector.extract_strided_slice %130 {offsets = [0, 128], sizes = [2, 128], strides = [1, 1]} : vector<2x384xf32> to vector<2x128xf32>
    %143 = vector.extract_strided_slice %133 {offsets = [0, 128], sizes = [2, 128], strides = [1, 1]} : vector<2x384xf32> to vector<2x128xf32>
    %144 = arith.addf %142, %143 : vector<2x128xf32>
    %145 = arith.negf %144 : vector<2x128xf32>
    %146 = math.exp %145 : vector<2x128xf32>
    %cst_36 = arith.constant 1.000000e+00 : f32
    %147 = vector.broadcast %cst_36 : f32 to vector<2x128xf32>
    %148 = arith.addf %147, %146 : vector<2x128xf32>
    %149 = arith.divf %147, %148 : vector<2x128xf32>
    %150 = vector.extract_strided_slice %130 {offsets = [0, 256], sizes = [2, 128], strides = [1, 1]} : vector<2x384xf32> to vector<2x128xf32>
    %151 = vector.extract_strided_slice %133 {offsets = [0, 256], sizes = [2, 128], strides = [1, 1]} : vector<2x384xf32> to vector<2x128xf32>
    %152 = arith.mulf %141, %151 : vector<2x128xf32>
    %153 = arith.addf %150, %152 : vector<2x128xf32>
    %154 = math.tanh %153 : vector<2x128xf32>
    %cst_37 = arith.constant 1.000000e+00 : f32
    %155 = vector.broadcast %cst_37 : f32 to vector<2x128xf32>
    %156 = arith.subf %155, %149 : vector<2x128xf32>
    %157 = arith.mulf %156, %154 : vector<2x128xf32>
    %158 = arith.mulf %149, %129 : vector<2x128xf32>
    %159 = arith.addf %157, %158 : vector<2x128xf32>
    %c10 = arith.constant 10 : index
    %c0_38 = arith.constant 0 : index
    %160 = vector.load %arg6[%c10, %c0_38] : memref<28x384xf32, #tpu.memory_space<vmem>>, vector<2x384xf32>
    %cst_39 = arith.constant dense<0.000000e+00> : vector<2x384xf32>
    %161 = tpu.matmul %159, %7, %cst_39 {dimension_numbers = #tpu.dot_dimension_numbers<[1], [0], [0], [1], [0, 0, 1, 1], [], []>} : vector<2x128xf32>, vector<128x384xf32>, vector<2x384xf32> -> vector<2x384xf32>
    %162 = vector.broadcast %8 : vector<1x384xf32> to vector<2x384xf32>
    %163 = arith.addf %161, %162 : vector<2x384xf32>
    %164 = vector.extract_strided_slice %160 {offsets = [0, 0], sizes = [2, 128], strides = [1, 1]} : vector<2x384xf32> to vector<2x128xf32>
    %165 = vector.extract_strided_slice %163 {offsets = [0, 0], sizes = [2, 128], strides = [1, 1]} : vector<2x384xf32> to vector<2x128xf32>
    %166 = arith.addf %164, %165 : vector<2x128xf32>
    %167 = arith.negf %166 : vector<2x128xf32>
    %168 = math.exp %167 : vector<2x128xf32>
    %cst_40 = arith.constant 1.000000e+00 : f32
    %169 = vector.broadcast %cst_40 : f32 to vector<2x128xf32>
    %170 = arith.addf %169, %168 : vector<2x128xf32>
    %171 = arith.divf %169, %170 : vector<2x128xf32>
    %172 = vector.extract_strided_slice %160 {offsets = [0, 128], sizes = [2, 128], strides = [1, 1]} : vector<2x384xf32> to vector<2x128xf32>
    %173 = vector.extract_strided_slice %163 {offsets = [0, 128], sizes = [2, 128], strides = [1, 1]} : vector<2x384xf32> to vector<2x128xf32>
    %174 = arith.addf %172, %173 : vector<2x128xf32>
    %175 = arith.negf %174 : vector<2x128xf32>
    %176 = math.exp %175 : vector<2x128xf32>
    %cst_41 = arith.constant 1.000000e+00 : f32
    %177 = vector.broadcast %cst_41 : f32 to vector<2x128xf32>
    %178 = arith.addf %177, %176 : vector<2x128xf32>
    %179 = arith.divf %177, %178 : vector<2x128xf32>
    %180 = vector.extract_strided_slice %160 {offsets = [0, 256], sizes = [2, 128], strides = [1, 1]} : vector<2x384xf32> to vector<2x128xf32>
    %181 = vector.extract_strided_slice %163 {offsets = [0, 256], sizes = [2, 128], strides = [1, 1]} : vector<2x384xf32> to vector<2x128xf32>
    %182 = arith.mulf %171, %181 : vector<2x128xf32>
    %183 = arith.addf %180, %182 : vector<2x128xf32>
    %184 = math.tanh %183 : vector<2x128xf32>
    %cst_42 = arith.constant 1.000000e+00 : f32
    %185 = vector.broadcast %cst_42 : f32 to vector<2x128xf32>
    %186 = arith.subf %185, %179 : vector<2x128xf32>
    %187 = arith.mulf %186, %184 : vector<2x128xf32>
    %188 = arith.mulf %179, %159 : vector<2x128xf32>
    %189 = arith.addf %187, %188 : vector<2x128xf32>
    %c12 = arith.constant 12 : index
    %c0_43 = arith.constant 0 : index
    %190 = vector.load %arg6[%c12, %c0_43] : memref<28x384xf32, #tpu.memory_space<vmem>>, vector<2x384xf32>
    %cst_44 = arith.constant dense<0.000000e+00> : vector<2x384xf32>
    %191 = tpu.matmul %189, %7, %cst_44 {dimension_numbers = #tpu.dot_dimension_numbers<[1], [0], [0], [1], [0, 0, 1, 1], [], []>} : vector<2x128xf32>, vector<128x384xf32>, vector<2x384xf32> -> vector<2x384xf32>
    %192 = vector.broadcast %8 : vector<1x384xf32> to vector<2x384xf32>
    %193 = arith.addf %191, %192 : vector<2x384xf32>
    %194 = vector.extract_strided_slice %190 {offsets = [0, 0], sizes = [2, 128], strides = [1, 1]} : vector<2x384xf32> to vector<2x128xf32>
    %195 = vector.extract_strided_slice %193 {offsets = [0, 0], sizes = [2, 128], strides = [1, 1]} : vector<2x384xf32> to vector<2x128xf32>
    %196 = arith.addf %194, %195 : vector<2x128xf32>
    %197 = arith.negf %196 : vector<2x128xf32>
    %198 = math.exp %197 : vector<2x128xf32>
    %cst_45 = arith.constant 1.000000e+00 : f32
    %199 = vector.broadcast %cst_45 : f32 to vector<2x128xf32>
    %200 = arith.addf %199, %198 : vector<2x128xf32>
    %201 = arith.divf %199, %200 : vector<2x128xf32>
    %202 = vector.extract_strided_slice %190 {offsets = [0, 128], sizes = [2, 128], strides = [1, 1]} : vector<2x384xf32> to vector<2x128xf32>
    %203 = vector.extract_strided_slice %193 {offsets = [0, 128], sizes = [2, 128], strides = [1, 1]} : vector<2x384xf32> to vector<2x128xf32>
    %204 = arith.addf %202, %203 : vector<2x128xf32>
    %205 = arith.negf %204 : vector<2x128xf32>
    %206 = math.exp %205 : vector<2x128xf32>
    %cst_46 = arith.constant 1.000000e+00 : f32
    %207 = vector.broadcast %cst_46 : f32 to vector<2x128xf32>
    %208 = arith.addf %207, %206 : vector<2x128xf32>
    %209 = arith.divf %207, %208 : vector<2x128xf32>
    %210 = vector.extract_strided_slice %190 {offsets = [0, 256], sizes = [2, 128], strides = [1, 1]} : vector<2x384xf32> to vector<2x128xf32>
    %211 = vector.extract_strided_slice %193 {offsets = [0, 256], sizes = [2, 128], strides = [1, 1]} : vector<2x384xf32> to vector<2x128xf32>
    %212 = arith.mulf %201, %211 : vector<2x128xf32>
    %213 = arith.addf %210, %212 : vector<2x128xf32>
    %214 = math.tanh %213 : vector<2x128xf32>
    %cst_47 = arith.constant 1.000000e+00 : f32
    %215 = vector.broadcast %cst_47 : f32 to vector<2x128xf32>
    %216 = arith.subf %215, %209 : vector<2x128xf32>
    %217 = arith.mulf %216, %214 : vector<2x128xf32>
    %218 = arith.mulf %209, %189 : vector<2x128xf32>
    %219 = arith.addf %217, %218 : vector<2x128xf32>
    %c14 = arith.constant 14 : index
    %c0_48 = arith.constant 0 : index
    %220 = vector.load %arg6[%c14, %c0_48] : memref<28x384xf32, #tpu.memory_space<vmem>>, vector<2x384xf32>
    %cst_49 = arith.constant dense<0.000000e+00> : vector<2x384xf32>
    %221 = tpu.matmul %219, %7, %cst_49 {dimension_numbers = #tpu.dot_dimension_numbers<[1], [0], [0], [1], [0, 0, 1, 1], [], []>} : vector<2x128xf32>, vector<128x384xf32>, vector<2x384xf32> -> vector<2x384xf32>
    %222 = vector.broadcast %8 : vector<1x384xf32> to vector<2x384xf32>
    %223 = arith.addf %221, %222 : vector<2x384xf32>
    %224 = vector.extract_strided_slice %220 {offsets = [0, 0], sizes = [2, 128], strides = [1, 1]} : vector<2x384xf32> to vector<2x128xf32>
    %225 = vector.extract_strided_slice %223 {offsets = [0, 0], sizes = [2, 128], strides = [1, 1]} : vector<2x384xf32> to vector<2x128xf32>
    %226 = arith.addf %224, %225 : vector<2x128xf32>
    %227 = arith.negf %226 : vector<2x128xf32>
    %228 = math.exp %227 : vector<2x128xf32>
    %cst_50 = arith.constant 1.000000e+00 : f32
    %229 = vector.broadcast %cst_50 : f32 to vector<2x128xf32>
    %230 = arith.addf %229, %228 : vector<2x128xf32>
    %231 = arith.divf %229, %230 : vector<2x128xf32>
    %232 = vector.extract_strided_slice %220 {offsets = [0, 128], sizes = [2, 128], strides = [1, 1]} : vector<2x384xf32> to vector<2x128xf32>
    %233 = vector.extract_strided_slice %223 {offsets = [0, 128], sizes = [2, 128], strides = [1, 1]} : vector<2x384xf32> to vector<2x128xf32>
    %234 = arith.addf %232, %233 : vector<2x128xf32>
    %235 = arith.negf %234 : vector<2x128xf32>
    %236 = math.exp %235 : vector<2x128xf32>
    %cst_51 = arith.constant 1.000000e+00 : f32
    %237 = vector.broadcast %cst_51 : f32 to vector<2x128xf32>
    %238 = arith.addf %237, %236 : vector<2x128xf32>
    %239 = arith.divf %237, %238 : vector<2x128xf32>
    %240 = vector.extract_strided_slice %220 {offsets = [0, 256], sizes = [2, 128], strides = [1, 1]} : vector<2x384xf32> to vector<2x128xf32>
    %241 = vector.extract_strided_slice %223 {offsets = [0, 256], sizes = [2, 128], strides = [1, 1]} : vector<2x384xf32> to vector<2x128xf32>
    %242 = arith.mulf %231, %241 : vector<2x128xf32>
    %243 = arith.addf %240, %242 : vector<2x128xf32>
    %244 = math.tanh %243 : vector<2x128xf32>
    %cst_52 = arith.constant 1.000000e+00 : f32
    %245 = vector.broadcast %cst_52 : f32 to vector<2x128xf32>
    %246 = arith.subf %245, %239 : vector<2x128xf32>
    %247 = arith.mulf %246, %244 : vector<2x128xf32>
    %248 = arith.mulf %239, %219 : vector<2x128xf32>
    %249 = arith.addf %247, %248 : vector<2x128xf32>
    %c16 = arith.constant 16 : index
    %c0_53 = arith.constant 0 : index
    %250 = vector.load %arg6[%c16, %c0_53] : memref<28x384xf32, #tpu.memory_space<vmem>>, vector<2x384xf32>
    %cst_54 = arith.constant dense<0.000000e+00> : vector<2x384xf32>
    %251 = tpu.matmul %249, %7, %cst_54 {dimension_numbers = #tpu.dot_dimension_numbers<[1], [0], [0], [1], [0, 0, 1, 1], [], []>} : vector<2x128xf32>, vector<128x384xf32>, vector<2x384xf32> -> vector<2x384xf32>
    %252 = vector.broadcast %8 : vector<1x384xf32> to vector<2x384xf32>
    %253 = arith.addf %251, %252 : vector<2x384xf32>
    %254 = vector.extract_strided_slice %250 {offsets = [0, 0], sizes = [2, 128], strides = [1, 1]} : vector<2x384xf32> to vector<2x128xf32>
    %255 = vector.extract_strided_slice %253 {offsets = [0, 0], sizes = [2, 128], strides = [1, 1]} : vector<2x384xf32> to vector<2x128xf32>
    %256 = arith.addf %254, %255 : vector<2x128xf32>
    %257 = arith.negf %256 : vector<2x128xf32>
    %258 = math.exp %257 : vector<2x128xf32>
    %cst_55 = arith.constant 1.000000e+00 : f32
    %259 = vector.broadcast %cst_55 : f32 to vector<2x128xf32>
    %260 = arith.addf %259, %258 : vector<2x128xf32>
    %261 = arith.divf %259, %260 : vector<2x128xf32>
    %262 = vector.extract_strided_slice %250 {offsets = [0, 128], sizes = [2, 128], strides = [1, 1]} : vector<2x384xf32> to vector<2x128xf32>
    %263 = vector.extract_strided_slice %253 {offsets = [0, 128], sizes = [2, 128], strides = [1, 1]} : vector<2x384xf32> to vector<2x128xf32>
    %264 = arith.addf %262, %263 : vector<2x128xf32>
    %265 = arith.negf %264 : vector<2x128xf32>
    %266 = math.exp %265 : vector<2x128xf32>
    %cst_56 = arith.constant 1.000000e+00 : f32
    %267 = vector.broadcast %cst_56 : f32 to vector<2x128xf32>
    %268 = arith.addf %267, %266 : vector<2x128xf32>
    %269 = arith.divf %267, %268 : vector<2x128xf32>
    %270 = vector.extract_strided_slice %250 {offsets = [0, 256], sizes = [2, 128], strides = [1, 1]} : vector<2x384xf32> to vector<2x128xf32>
    %271 = vector.extract_strided_slice %253 {offsets = [0, 256], sizes = [2, 128], strides = [1, 1]} : vector<2x384xf32> to vector<2x128xf32>
    %272 = arith.mulf %261, %271 : vector<2x128xf32>
    %273 = arith.addf %270, %272 : vector<2x128xf32>
    %274 = math.tanh %273 : vector<2x128xf32>
    %cst_57 = arith.constant 1.000000e+00 : f32
    %275 = vector.broadcast %cst_57 : f32 to vector<2x128xf32>
    %276 = arith.subf %275, %269 : vector<2x128xf32>
    %277 = arith.mulf %276, %274 : vector<2x128xf32>
    %278 = arith.mulf %269, %249 : vector<2x128xf32>
    %279 = arith.addf %277, %278 : vector<2x128xf32>
    %c18 = arith.constant 18 : index
    %c0_58 = arith.constant 0 : index
    %280 = vector.load %arg6[%c18, %c0_58] : memref<28x384xf32, #tpu.memory_space<vmem>>, vector<2x384xf32>
    %cst_59 = arith.constant dense<0.000000e+00> : vector<2x384xf32>
    %281 = tpu.matmul %279, %7, %cst_59 {dimension_numbers = #tpu.dot_dimension_numbers<[1], [0], [0], [1], [0, 0, 1, 1], [], []>} : vector<2x128xf32>, vector<128x384xf32>, vector<2x384xf32> -> vector<2x384xf32>
    %282 = vector.broadcast %8 : vector<1x384xf32> to vector<2x384xf32>
    %283 = arith.addf %281, %282 : vector<2x384xf32>
    %284 = vector.extract_strided_slice %280 {offsets = [0, 0], sizes = [2, 128], strides = [1, 1]} : vector<2x384xf32> to vector<2x128xf32>
    %285 = vector.extract_strided_slice %283 {offsets = [0, 0], sizes = [2, 128], strides = [1, 1]} : vector<2x384xf32> to vector<2x128xf32>
    %286 = arith.addf %284, %285 : vector<2x128xf32>
    %287 = arith.negf %286 : vector<2x128xf32>
    %288 = math.exp %287 : vector<2x128xf32>
    %cst_60 = arith.constant 1.000000e+00 : f32
    %289 = vector.broadcast %cst_60 : f32 to vector<2x128xf32>
    %290 = arith.addf %289, %288 : vector<2x128xf32>
    %291 = arith.divf %289, %290 : vector<2x128xf32>
    %292 = vector.extract_strided_slice %280 {offsets = [0, 128], sizes = [2, 128], strides = [1, 1]} : vector<2x384xf32> to vector<2x128xf32>
    %293 = vector.extract_strided_slice %283 {offsets = [0, 128], sizes = [2, 128], strides = [1, 1]} : vector<2x384xf32> to vector<2x128xf32>
    %294 = arith.addf %292, %293 : vector<2x128xf32>
    %295 = arith.negf %294 : vector<2x128xf32>
    %296 = math.exp %295 : vector<2x128xf32>
    %cst_61 = arith.constant 1.000000e+00 : f32
    %297 = vector.broadcast %cst_61 : f32 to vector<2x128xf32>
    %298 = arith.addf %297, %296 : vector<2x128xf32>
    %299 = arith.divf %297, %298 : vector<2x128xf32>
    %300 = vector.extract_strided_slice %280 {offsets = [0, 256], sizes = [2, 128], strides = [1, 1]} : vector<2x384xf32> to vector<2x128xf32>
    %301 = vector.extract_strided_slice %283 {offsets = [0, 256], sizes = [2, 128], strides = [1, 1]} : vector<2x384xf32> to vector<2x128xf32>
    %302 = arith.mulf %291, %301 : vector<2x128xf32>
    %303 = arith.addf %300, %302 : vector<2x128xf32>
    %304 = math.tanh %303 : vector<2x128xf32>
    %cst_62 = arith.constant 1.000000e+00 : f32
    %305 = vector.broadcast %cst_62 : f32 to vector<2x128xf32>
    %306 = arith.subf %305, %299 : vector<2x128xf32>
    %307 = arith.mulf %306, %304 : vector<2x128xf32>
    %308 = arith.mulf %299, %279 : vector<2x128xf32>
    %309 = arith.addf %307, %308 : vector<2x128xf32>
    %c20 = arith.constant 20 : index
    %c0_63 = arith.constant 0 : index
    %310 = vector.load %arg6[%c20, %c0_63] : memref<28x384xf32, #tpu.memory_space<vmem>>, vector<2x384xf32>
    %cst_64 = arith.constant dense<0.000000e+00> : vector<2x384xf32>
    %311 = tpu.matmul %309, %7, %cst_64 {dimension_numbers = #tpu.dot_dimension_numbers<[1], [0], [0], [1], [0, 0, 1, 1], [], []>} : vector<2x128xf32>, vector<128x384xf32>, vector<2x384xf32> -> vector<2x384xf32>
    %312 = vector.broadcast %8 : vector<1x384xf32> to vector<2x384xf32>
    %313 = arith.addf %311, %312 : vector<2x384xf32>
    %314 = vector.extract_strided_slice %310 {offsets = [0, 0], sizes = [2, 128], strides = [1, 1]} : vector<2x384xf32> to vector<2x128xf32>
    %315 = vector.extract_strided_slice %313 {offsets = [0, 0], sizes = [2, 128], strides = [1, 1]} : vector<2x384xf32> to vector<2x128xf32>
    %316 = arith.addf %314, %315 : vector<2x128xf32>
    %317 = arith.negf %316 : vector<2x128xf32>
    %318 = math.exp %317 : vector<2x128xf32>
    %cst_65 = arith.constant 1.000000e+00 : f32
    %319 = vector.broadcast %cst_65 : f32 to vector<2x128xf32>
    %320 = arith.addf %319, %318 : vector<2x128xf32>
    %321 = arith.divf %319, %320 : vector<2x128xf32>
    %322 = vector.extract_strided_slice %310 {offsets = [0, 128], sizes = [2, 128], strides = [1, 1]} : vector<2x384xf32> to vector<2x128xf32>
    %323 = vector.extract_strided_slice %313 {offsets = [0, 128], sizes = [2, 128], strides = [1, 1]} : vector<2x384xf32> to vector<2x128xf32>
    %324 = arith.addf %322, %323 : vector<2x128xf32>
    %325 = arith.negf %324 : vector<2x128xf32>
    %326 = math.exp %325 : vector<2x128xf32>
    %cst_66 = arith.constant 1.000000e+00 : f32
    %327 = vector.broadcast %cst_66 : f32 to vector<2x128xf32>
    %328 = arith.addf %327, %326 : vector<2x128xf32>
    %329 = arith.divf %327, %328 : vector<2x128xf32>
    %330 = vector.extract_strided_slice %310 {offsets = [0, 256], sizes = [2, 128], strides = [1, 1]} : vector<2x384xf32> to vector<2x128xf32>
    %331 = vector.extract_strided_slice %313 {offsets = [0, 256], sizes = [2, 128], strides = [1, 1]} : vector<2x384xf32> to vector<2x128xf32>
    %332 = arith.mulf %321, %331 : vector<2x128xf32>
    %333 = arith.addf %330, %332 : vector<2x128xf32>
    %334 = math.tanh %333 : vector<2x128xf32>
    %cst_67 = arith.constant 1.000000e+00 : f32
    %335 = vector.broadcast %cst_67 : f32 to vector<2x128xf32>
    %336 = arith.subf %335, %329 : vector<2x128xf32>
    %337 = arith.mulf %336, %334 : vector<2x128xf32>
    %338 = arith.mulf %329, %309 : vector<2x128xf32>
    %339 = arith.addf %337, %338 : vector<2x128xf32>
    %c22 = arith.constant 22 : index
    %c0_68 = arith.constant 0 : index
    %340 = vector.load %arg6[%c22, %c0_68] : memref<28x384xf32, #tpu.memory_space<vmem>>, vector<2x384xf32>
    %cst_69 = arith.constant dense<0.000000e+00> : vector<2x384xf32>
    %341 = tpu.matmul %339, %7, %cst_69 {dimension_numbers = #tpu.dot_dimension_numbers<[1], [0], [0], [1], [0, 0, 1, 1], [], []>} : vector<2x128xf32>, vector<128x384xf32>, vector<2x384xf32> -> vector<2x384xf32>
    %342 = vector.broadcast %8 : vector<1x384xf32> to vector<2x384xf32>
    %343 = arith.addf %341, %342 : vector<2x384xf32>
    %344 = vector.extract_strided_slice %340 {offsets = [0, 0], sizes = [2, 128], strides = [1, 1]} : vector<2x384xf32> to vector<2x128xf32>
    %345 = vector.extract_strided_slice %343 {offsets = [0, 0], sizes = [2, 128], strides = [1, 1]} : vector<2x384xf32> to vector<2x128xf32>
    %346 = arith.addf %344, %345 : vector<2x128xf32>
    %347 = arith.negf %346 : vector<2x128xf32>
    %348 = math.exp %347 : vector<2x128xf32>
    %cst_70 = arith.constant 1.000000e+00 : f32
    %349 = vector.broadcast %cst_70 : f32 to vector<2x128xf32>
    %350 = arith.addf %349, %348 : vector<2x128xf32>
    %351 = arith.divf %349, %350 : vector<2x128xf32>
    %352 = vector.extract_strided_slice %340 {offsets = [0, 128], sizes = [2, 128], strides = [1, 1]} : vector<2x384xf32> to vector<2x128xf32>
    %353 = vector.extract_strided_slice %343 {offsets = [0, 128], sizes = [2, 128], strides = [1, 1]} : vector<2x384xf32> to vector<2x128xf32>
    %354 = arith.addf %352, %353 : vector<2x128xf32>
    %355 = arith.negf %354 : vector<2x128xf32>
    %356 = math.exp %355 : vector<2x128xf32>
    %cst_71 = arith.constant 1.000000e+00 : f32
    %357 = vector.broadcast %cst_71 : f32 to vector<2x128xf32>
    %358 = arith.addf %357, %356 : vector<2x128xf32>
    %359 = arith.divf %357, %358 : vector<2x128xf32>
    %360 = vector.extract_strided_slice %340 {offsets = [0, 256], sizes = [2, 128], strides = [1, 1]} : vector<2x384xf32> to vector<2x128xf32>
    %361 = vector.extract_strided_slice %343 {offsets = [0, 256], sizes = [2, 128], strides = [1, 1]} : vector<2x384xf32> to vector<2x128xf32>
    %362 = arith.mulf %351, %361 : vector<2x128xf32>
    %363 = arith.addf %360, %362 : vector<2x128xf32>
    %364 = math.tanh %363 : vector<2x128xf32>
    %cst_72 = arith.constant 1.000000e+00 : f32
    %365 = vector.broadcast %cst_72 : f32 to vector<2x128xf32>
    %366 = arith.subf %365, %359 : vector<2x128xf32>
    %367 = arith.mulf %366, %364 : vector<2x128xf32>
    %368 = arith.mulf %359, %339 : vector<2x128xf32>
    %369 = arith.addf %367, %368 : vector<2x128xf32>
    %c24 = arith.constant 24 : index
    %c0_73 = arith.constant 0 : index
    %370 = vector.load %arg6[%c24, %c0_73] : memref<28x384xf32, #tpu.memory_space<vmem>>, vector<2x384xf32>
    %cst_74 = arith.constant dense<0.000000e+00> : vector<2x384xf32>
    %371 = tpu.matmul %369, %7, %cst_74 {dimension_numbers = #tpu.dot_dimension_numbers<[1], [0], [0], [1], [0, 0, 1, 1], [], []>} : vector<2x128xf32>, vector<128x384xf32>, vector<2x384xf32> -> vector<2x384xf32>
    %372 = vector.broadcast %8 : vector<1x384xf32> to vector<2x384xf32>
    %373 = arith.addf %371, %372 : vector<2x384xf32>
    %374 = vector.extract_strided_slice %370 {offsets = [0, 0], sizes = [2, 128], strides = [1, 1]} : vector<2x384xf32> to vector<2x128xf32>
    %375 = vector.extract_strided_slice %373 {offsets = [0, 0], sizes = [2, 128], strides = [1, 1]} : vector<2x384xf32> to vector<2x128xf32>
    %376 = arith.addf %374, %375 : vector<2x128xf32>
    %377 = arith.negf %376 : vector<2x128xf32>
    %378 = math.exp %377 : vector<2x128xf32>
    %cst_75 = arith.constant 1.000000e+00 : f32
    %379 = vector.broadcast %cst_75 : f32 to vector<2x128xf32>
    %380 = arith.addf %379, %378 : vector<2x128xf32>
    %381 = arith.divf %379, %380 : vector<2x128xf32>
    %382 = vector.extract_strided_slice %370 {offsets = [0, 128], sizes = [2, 128], strides = [1, 1]} : vector<2x384xf32> to vector<2x128xf32>
    %383 = vector.extract_strided_slice %373 {offsets = [0, 128], sizes = [2, 128], strides = [1, 1]} : vector<2x384xf32> to vector<2x128xf32>
    %384 = arith.addf %382, %383 : vector<2x128xf32>
    %385 = arith.negf %384 : vector<2x128xf32>
    %386 = math.exp %385 : vector<2x128xf32>
    %cst_76 = arith.constant 1.000000e+00 : f32
    %387 = vector.broadcast %cst_76 : f32 to vector<2x128xf32>
    %388 = arith.addf %387, %386 : vector<2x128xf32>
    %389 = arith.divf %387, %388 : vector<2x128xf32>
    %390 = vector.extract_strided_slice %370 {offsets = [0, 256], sizes = [2, 128], strides = [1, 1]} : vector<2x384xf32> to vector<2x128xf32>
    %391 = vector.extract_strided_slice %373 {offsets = [0, 256], sizes = [2, 128], strides = [1, 1]} : vector<2x384xf32> to vector<2x128xf32>
    %392 = arith.mulf %381, %391 : vector<2x128xf32>
    %393 = arith.addf %390, %392 : vector<2x128xf32>
    %394 = math.tanh %393 : vector<2x128xf32>
    %cst_77 = arith.constant 1.000000e+00 : f32
    %395 = vector.broadcast %cst_77 : f32 to vector<2x128xf32>
    %396 = arith.subf %395, %389 : vector<2x128xf32>
    %397 = arith.mulf %396, %394 : vector<2x128xf32>
    %398 = arith.mulf %389, %369 : vector<2x128xf32>
    %399 = arith.addf %397, %398 : vector<2x128xf32>
    %c26 = arith.constant 26 : index
    %c0_78 = arith.constant 0 : index
    %400 = vector.load %arg6[%c26, %c0_78] : memref<28x384xf32, #tpu.memory_space<vmem>>, vector<2x384xf32>
    %cst_79 = arith.constant dense<0.000000e+00> : vector<2x384xf32>
    %401 = tpu.matmul %399, %7, %cst_79 {dimension_numbers = #tpu.dot_dimension_numbers<[1], [0], [0], [1], [0, 0, 1, 1], [], []>} : vector<2x128xf32>, vector<128x384xf32>, vector<2x384xf32> -> vector<2x384xf32>
    %402 = vector.broadcast %8 : vector<1x384xf32> to vector<2x384xf32>
    %403 = arith.addf %401, %402 : vector<2x384xf32>
    %404 = vector.extract_strided_slice %400 {offsets = [0, 0], sizes = [2, 128], strides = [1, 1]} : vector<2x384xf32> to vector<2x128xf32>
    %405 = vector.extract_strided_slice %403 {offsets = [0, 0], sizes = [2, 128], strides = [1, 1]} : vector<2x384xf32> to vector<2x128xf32>
    %406 = arith.addf %404, %405 : vector<2x128xf32>
    %407 = arith.negf %406 : vector<2x128xf32>
    %408 = math.exp %407 : vector<2x128xf32>
    %cst_80 = arith.constant 1.000000e+00 : f32
    %409 = vector.broadcast %cst_80 : f32 to vector<2x128xf32>
    %410 = arith.addf %409, %408 : vector<2x128xf32>
    %411 = arith.divf %409, %410 : vector<2x128xf32>
    %412 = vector.extract_strided_slice %400 {offsets = [0, 128], sizes = [2, 128], strides = [1, 1]} : vector<2x384xf32> to vector<2x128xf32>
    %413 = vector.extract_strided_slice %403 {offsets = [0, 128], sizes = [2, 128], strides = [1, 1]} : vector<2x384xf32> to vector<2x128xf32>
    %414 = arith.addf %412, %413 : vector<2x128xf32>
    %415 = arith.negf %414 : vector<2x128xf32>
    %416 = math.exp %415 : vector<2x128xf32>
    %cst_81 = arith.constant 1.000000e+00 : f32
    %417 = vector.broadcast %cst_81 : f32 to vector<2x128xf32>
    %418 = arith.addf %417, %416 : vector<2x128xf32>
    %419 = arith.divf %417, %418 : vector<2x128xf32>
    %420 = vector.extract_strided_slice %400 {offsets = [0, 256], sizes = [2, 128], strides = [1, 1]} : vector<2x384xf32> to vector<2x128xf32>
    %421 = vector.extract_strided_slice %403 {offsets = [0, 256], sizes = [2, 128], strides = [1, 1]} : vector<2x384xf32> to vector<2x128xf32>
    %422 = arith.mulf %411, %421 : vector<2x128xf32>
    %423 = arith.addf %420, %422 : vector<2x128xf32>
    %424 = math.tanh %423 : vector<2x128xf32>
    %cst_82 = arith.constant 1.000000e+00 : f32
    %425 = vector.broadcast %cst_82 : f32 to vector<2x128xf32>
    %426 = arith.subf %425, %419 : vector<2x128xf32>
    %427 = arith.mulf %426, %424 : vector<2x128xf32>
    %428 = arith.mulf %419, %399 : vector<2x128xf32>
    %429 = arith.addf %427, %428 : vector<2x128xf32>
    %c0_83 = arith.constant 0 : index
    %c0_84 = arith.constant 0 : index
    %430 = vector.load %arg5[%c0_83, %c0_84] : memref<2x128xf32, #tpu.memory_space<vmem>>, vector<2x128xf32>
    tpu.vector_store %arg5[%c0_83, %c0_84], %429 {strides = array<i32>} : memref<2x128xf32, #tpu.memory_space<vmem>>, vector<2x128xf32>,
    return
  }
}

</mosaic_0001>

<llo_original>
// kernel: tpu_custom_call.1
$region0: #{tpu_custom_call.1}
  #allocation0 [shape = 'u32[]', space=smem, size = 0x4, offset = 0x4, fixed_abs, tag = 'smem constant byte address 0x4 - core index']
  #allocation1 [shape = 'u32[72,128]{1,0:T(1,128)}', space=vmem, size = 0x9000, scoped, tag = 'internal scratch']
  #allocation2 [shape = 'f32[28,384]{1,0:T(8,128)}', space=vmem, size = 0xc000, scoped, tag = 'scratch operand']
  %s0 = inlined_call_operand.hbm [shape: f32[28,64], index: 0, kind: input, shape index: {}]
  %s1 = inlined_call_operand.hbm [shape: f32[64,384], index: 1, kind: input, shape index: {}]
  %s2 = inlined_call_operand.hbm [shape: f32[128,384], index: 2, kind: input, shape index: {}]
  %s3 = inlined_call_operand.hbm [shape: f32[1,384], index: 3, kind: input, shape index: {}]
  %s4 = inlined_call_operand.vmem [shape: f32[1,384], index: 4, kind: input, shape index: {}]
  %s5 = inlined_call_operand.hbm [shape: f32[2,128], index: 5, kind: output, shape index: {}]
  %s6 = sld [smem:[#allocation0]]
  $region46: #{tpu_custom_call.1} parent=0
    _
  %s8 = ssub.s32 1, %s6
  %s9 = scalar_select 0, %s8, %s6
  $region1: #{tpu_custom_call.1} parent=0
    #allocation3 [shape = 'u8[16384]{0}', space=vmem, size = 0x4000, scoped, tag = 'input window, operand 0, single buffered']
    #allocation4 [shape = 's32[1]{0}', space=sflag, size = 0x4, scoped, tag = 'scoped memory for tpu_custom_call.1']
    #allocation5 [shape = 's32[1]{0}', space=sflag, size = 0x4, scoped, tag = 'scoped memory for tpu_custom_call.1']
    #allocation6 [shape = 'u8[98304]{0}', space=vmem, size = 0x18000, scoped, tag = 'input window, operand 1, single buffered']
    #allocation7 [shape = 's32[1]{0}', space=sflag, size = 0x4, scoped, tag = 'scoped memory for tpu_custom_call.1']
    #allocation8 [shape = 'u8[196608]{0}', space=vmem, size = 0x30000, scoped, tag = 'input window, operand 2, single buffered']
    #allocation9 [shape = 'u8[1536]{0}', space=vmem, size = 0x800, scoped, tag = 'input window, operand 3, single buffered']
    #allocation10 [shape = 's32[1]{0}', space=sflag, size = 0x4, scoped, tag = 'scoped memory for tpu_custom_call.1']
    #allocation11 [shape = 'u8[1024]{0}', space=vmem, size = 0x400, scoped, tag = 'output window, operand 0, single buffered']
    %10 = vsyncpa [#allocation4], 0
    %11 = vsyncpa [#allocation7], 0
    %12 = vsyncpa [#allocation10], 0
    %13 = vsyncpa [#allocation5], 0
    // Predicated region
    $region2: #{tpu_custom_call.1} parent=1 // pred_check
      _
    $region3: #{tpu_custom_call.1} parent=1 // pred_check_branch
      %15 = sbr.rel (0) target = $region5
    $region4: #{tpu_custom_call.1} parent=1 // pred_region
      %17 = vsyncadd [#allocation4], 0
      %s18 = sshll.u32 %s0, 4
      %s19 = int_to_ptr.hbm [resolvable:$true] %s18
      %s20 = sshll.u32 [#allocation3], 4
      %s21 = int_to_ptr.vmem [resolvable:$true] %s20
      %26 = dma.hbm_to_vmem [thread:$0]  %s19, 512, %s21, [#allocation4], 128, 128, 8
    $region5: #{tpu_custom_call.1} parent=1 // pred_fallthru
      _
    // Predicated region
    $region6: #{tpu_custom_call.1} parent=1 // pred_check
      _
    $region7: #{tpu_custom_call.1} parent=1 // pred_check_branch
      %28 = sbr.rel (0) target = $region9
    $region8: #{tpu_custom_call.1} parent=1 // pred_region
      %30 = vsyncadd [#allocation7], 0
      %s31 = sshll.u32 %s1, 4
      %s32 = int_to_ptr.hbm [resolvable:$true] %s31
      %s33 = sshll.u32 [#allocation6], 4
      %s34 = int_to_ptr.vmem [resolvable:$true] %s33
      %39 = dma.hbm_to_vmem [thread:$0]  %s32, 3072, %s34, [#allocation7], 384, 384, 24
    $region9: #{tpu_custom_call.1} parent=1 // pred_fallthru
      _
    // Predicated region
    $region10: #{tpu_custom_call.1} parent=1 // pred_check
      _
    $region11: #{tpu_custom_call.1} parent=1 // pred_check_branch
      %41 = sbr.rel (0) target = $region13
    $region12: #{tpu_custom_call.1} parent=1 // pred_region
      %43 = vsyncadd [#allocation7], 0
      %s44 = sshll.u32 %s2, 4
      %s45 = int_to_ptr.hbm [resolvable:$true] %s44
      %s46 = sshll.u32 [#allocation8], 4
      %s47 = int_to_ptr.vmem [resolvable:$true] %s46
      %52 = dma.hbm_to_vmem [thread:$0]  %s45, 6144, %s47, [#allocation7], 384, 384, 24
    $region13: #{tpu_custom_call.1} parent=1 // pred_fallthru
      _
    // Predicated region
    $region14: #{tpu_custom_call.1} parent=1 // pred_check
      _
    $region15: #{tpu_custom_call.1} parent=1 // pred_check_branch
      %54 = sbr.rel (0) target = $region17
    $region16: #{tpu_custom_call.1} parent=1 // pred_region
      %56 = vsyncadd [#allocation10], 0
      %s58 = sshll.u32 %s3, 4
      %s59 = int_to_ptr.hbm [resolvable:$true] %s58
      %s60 = sshll.u32 [#allocation9], 4
      %s61 = int_to_ptr.vmem [resolvable:$true] %s60
      %63 = dma.hbm_to_vmem [thread:$0]  %s59, 48, %s61, [#allocation10]
    $region17: #{tpu_custom_call.1} parent=1 // pred_fallthru
      _
    // Predicated region
    $region18: #{tpu_custom_call.1} parent=1 // pred_check
      _
    $region19: #{tpu_custom_call.1} parent=1 // pred_check_branch
      %65 = sbr.rel (0) target = $region21
    $region20: #{tpu_custom_call.1} parent=1 // pred_region
      _
    $region21: #{tpu_custom_call.1} parent=1 // pred_fallthru
      _
    // Predicated region
    $region22: #{tpu_custom_call.1} parent=1 // pred_check
      _
    $region23: #{tpu_custom_call.1} parent=1 // pred_check_branch
      %67 = sbr.rel (0) target = $region25
    $region24: #{tpu_custom_call.1} parent=1 // pred_region
      %69 = dma.done [#allocation4], 512
    $region25: #{tpu_custom_call.1} parent=1 // pred_fallthru
      _
    // Predicated region
    $region26: #{tpu_custom_call.1} parent=1 // pred_check
      _
    $region27: #{tpu_custom_call.1} parent=1 // pred_check_branch
      %71 = sbr.rel (0) target = $region29
    $region28: #{tpu_custom_call.1} parent=1 // pred_region
      %73 = dma.done [#allocation7], 3072
    $region29: #{tpu_custom_call.1} parent=1 // pred_fallthru
      _
    // Predicated region
    $region30: #{tpu_custom_call.1} parent=1 // pred_check
      _
    $region31: #{tpu_custom_call.1} parent=1 // pred_check_branch
      %75 = sbr.rel (0) target = $region33
    $region32: #{tpu_custom_call.1} parent=1 // pred_region
      %77 = dma.done [#allocation7], 6144
    $region33: #{tpu_custom_call.1} parent=1 // pred_fallthru
      _
    // Predicated region
    $region34: #{tpu_custom_call.1} parent=1 // pred_check
      _
    $region35: #{tpu_custom_call.1} parent=1 // pred_check_branch
      %79 = sbr.rel (0) target = $region37
    $region36: #{tpu_custom_call.1} parent=1 // pred_region
      %81 = dma.done [#allocation10], 48
    $region37: #{tpu_custom_call.1} parent=1 // pred_fallthru
      _
    %v82 = vld [vmem:[#allocation3] sm:$0xff]
    %v83 = vld [vmem:[#allocation3 + $0x8] sm:$0xff]
    %v84 = vld [vmem:[#allocation3 + $0x10] sm:$0xff]
    %v85 = vld [vmem:[#allocation3 + $0x18] sm:$0xf]
    %v86 = vld [vmem:[#allocation6] sm:$0xff]
    %v87 = vld [vmem:[#allocation6 + $0x8] sm:$0xff]
    %v88 = vld [vmem:[#allocation6 + $0x10] sm:$0xff]
    %v89 = vld [vmem:[#allocation6 + $0x18] sm:$0xff]
    %v90 = vld [vmem:[#allocation6 + $0x20] sm:$0xff]
    %v91 = vld [vmem:[#allocation6 + $0x28] sm:$0xff]
    %v92 = vld [vmem:[#allocation6 + $0x30] sm:$0xff]
    %v93 = vld [vmem:[#allocation6 + $0x38] sm:$0xff]
    %v94 = vld [vmem:[#allocation6 + $0x40] sm:$0xff]
    %v95 = vld [vmem:[#allocation6 + $0x48] sm:$0xff]
    %v96 = vld [vmem:[#allocation6 + $0x50] sm:$0xff]
    %v97 = vld [vmem:[#allocation6 + $0x58] sm:$0xff]
    %v98 = vld [vmem:[#allocation6 + $0x60] sm:$0xff]
    %v99 = vld [vmem:[#allocation6 + $0x68] sm:$0xff]
    %v100 = vld [vmem:[#allocation6 + $0x70] sm:$0xff]
    %v101 = vld [vmem:[#allocation6 + $0x78] sm:$0xff]
    %v102 = vld [vmem:[#allocation6 + $0x80] sm:$0xff]
    %v103 = vld [vmem:[#allocation6 + $0x88] sm:$0xff]
    %v104 = vld [vmem:[#allocation6 + $0x90] sm:$0xff]
    %v105 = vld [vmem:[#allocation6 + $0x98] sm:$0xff]
    %v106 = vld [vmem:[#allocation6 + $0xa0] sm:$0xff]
    %v107 = vld [vmem:[#allocation6 + $0xa8] sm:$0xff]
    %v108 = vld [vmem:[#allocation6 + $0xb0] sm:$0xff]
    %v109 = vld [vmem:[#allocation6 + $0xb8] sm:$0xff]
    %v110 = vld [vmem:[#allocation9] sm:$0x7]
    %v112 = vperm.slane %v110, 0
    %v113 = vperm.slane %v110, 1
    %v114 = vperm.slane %v110, 2
    %vm118 = vcmask 523264
    %v120 = vsel %vm118, %v82, 0
    %v123 = vsel %vm118, %v83, 0
    %v126 = vsel %vm118, %v84, 0
    %v129 = vsel %vm118, %v85, 0
    %131 = vmatpush.msra.mxu0 0.0
    %132 = vmatpush.msra.mxu0 0.0
    %133 = vmatpush.msra.mxu0 0.0
    %134 = vmatpush.msra.mxu0 0.0
    %135 = vmatpush.msra.mxu0 0.0
    %136 = vmatpush.msra.mxu0 0.0
    %137 = vmatpush.msra.mxu0 0.0
    %138 = vmatpush.msra.mxu0 0.0
    %139 = vmatpush.msra.mxu0 %v107
    %140 = vmatpush.msra.mxu0 %v104
    %141 = vmatpush.msra.mxu0 %v101
    %142 = vmatpush.msra.mxu0 %v98
    %143 = vmatpush.msra.mxu0 %v95
    %144 = vmatpush.msra.mxu0 %v92
    %145 = vmatpush.msra.mxu0 %v89
    %146 = vmatpush.msra.mxu0 %v86
    %147 = vmatmul.f32.gmra.mxu0 %v120
    %v148 = vpop.f32.mrf.mxu0
    %v149 = vadd.f32 %v112, %v148
    %150 = vmatmul.f32.gmra.mxu0 %v123
    %v151 = vpop.f32.mrf.mxu0
    %v152 = vadd.f32 %v112, %v151
    %153 = vmatmul.f32.gmra.mxu0 %v126
    %v154 = vpop.f32.mrf.mxu0
    %v155 = vadd.f32 %v112, %v154
    %156 = vmatmul.f32.gmra.mxu0 %v129
    %v157 = vpop.f32.mrf.mxu0
    %v158 = vadd.f32 %v112, %v157
    %159 = vdwg.mxu0
    %160 = vmatpush.msra.mxu0 0.0
    %161 = vmatpush.msra.mxu0 0.0
    %162 = vmatpush.msra.mxu0 0.0
    %163 = vmatpush.msra.mxu0 0.0
    %164 = vmatpush.msra.mxu0 0.0
    %165 = vmatpush.msra.mxu0 0.0
    %166 = vmatpush.msra.mxu0 0.0
    %167 = vmatpush.msra.mxu0 0.0
    %168 = vmatpush.msra.mxu0 %v108
    %169 = vmatpush.msra.mxu0 %v105
    %170 = vmatpush.msra.mxu0 %v102
    %171 = vmatpush.msra.mxu0 %v99
    %172 = vmatpush.msra.mxu0 %v96
    %173 = vmatpush.msra.mxu0 %v93
    %174 = vmatpush.msra.mxu0 %v90
    %175 = vmatpush.msra.mxu0 %v87
    %176 = vmatmul.f32.gmra.mxu0 %v120
    %v177 = vpop.f32.mrf.mxu0
    %v178 = vadd.f32 %v113, %v177
    %179 = vmatmul.f32.gmra.mxu0 %v123
    %v180 = vpop.f32.mrf.mxu0
    %v181 = vadd.f32 %v113, %v180
    %182 = vmatmul.f32.gmra.mxu0 %v126
    %v183 = vpop.f32.mrf.mxu0
    %v184 = vadd.f32 %v113, %v183
    %185 = vmatmul.f32.gmra.mxu0 %v129
    %v186 = vpop.f32.mrf.mxu0
    %v187 = vadd.f32 %v113, %v186
    %188 = vdwg.mxu0
    %189 = vmatpush.msra.mxu0 0.0
    %190 = vmatpush.msra.mxu0 0.0
    %191 = vmatpush.msra.mxu0 0.0
    %192 = vmatpush.msra.mxu0 0.0
    %193 = vmatpush.msra.mxu0 0.0
    %194 = vmatpush.msra.mxu0 0.0
    %195 = vmatpush.msra.mxu0 0.0
    %196 = vmatpush.msra.mxu0 0.0
    %197 = vmatpush.msra.mxu0 %v109
    %198 = vmatpush.msra.mxu0 %v106
    %199 = vmatpush.msra.mxu0 %v103
    %200 = vmatpush.msra.mxu0 %v100
    %201 = vmatpush.msra.mxu0 %v97
    %202 = vmatpush.msra.mxu0 %v94
    %203 = vmatpush.msra.mxu0 %v91
    %204 = vmatpush.msra.mxu0 %v88
    %205 = vmatmul.f32.gmra.mxu0 %v120
    %v206 = vpop.f32.mrf.mxu0
    %v207 = vadd.f32 %v114, %v206
    %208 = vmatmul.f32.gmra.mxu0 %v123
    %v209 = vpop.f32.mrf.mxu0
    %v210 = vadd.f32 %v114, %v209
    %211 = vmatmul.f32.gmra.mxu0 %v126
    %v212 = vpop.f32.mrf.mxu0
    %v213 = vadd.f32 %v114, %v212
    %214 = vmatmul.f32.gmra.mxu0 %v129
    %v215 = vpop.f32.mrf.mxu0
    %v216 = vadd.f32 %v114, %v215
    %217 = vdwg.mxu0
    %218 = vst [vmem:[#allocation2] sm:$0xff] %v149
    %219 = vst [vmem:[#allocation2 + $0x8] sm:$0xff] %v178
    %220 = vst [vmem:[#allocation2 + $0x10] sm:$0xff] %v207
    %221 = vst [vmem:[#allocation2 + $0x18] sm:$0xff] %v152
    %222 = vst [vmem:[#allocation2 + $0x20] sm:$0xff] %v181
    %223 = vst [vmem:[#allocation2 + $0x28] sm:$0xff] %v210
    %224 = vst [vmem:[#allocation2 + $0x30] sm:$0xff] %v155
    %225 = vst [vmem:[#allocation2 + $0x38] sm:$0xff] %v184
    %226 = vst [vmem:[#allocation2 + $0x40] sm:$0xff] %v213
    %227 = vst [vmem:[#allocation2 + $0x48] sm:$0xf] %v158
    %228 = vst [vmem:[#allocation2 + $0x50] sm:$0xf] %v187
    %229 = vst [vmem:[#allocation2 + $0x58] sm:$0xf] %v216
    %v230 = vld [vmem:[#allocation8] sm:$0xff]
    %v231 = vld [vmem:[#allocation8 + $0x8] sm:$0xff]
    %v232 = vld [vmem:[#allocation8 + $0x10] sm:$0xff]
    %v233 = vld [vmem:[#allocation8 + $0x18] sm:$0xff]
    %v234 = vld [vmem:[#allocation8 + $0x20] sm:$0xff]
    %v235 = vld [vmem:[#allocation8 + $0x28] sm:$0xff]
    %v236 = vld [vmem:[#allocation8 + $0x30] sm:$0xff]
    %v237 = vld [vmem:[#allocation8 + $0x38] sm:$0xff]
    %v238 = vld [vmem:[#allocation8 + $0x40] sm:$0xff]
    %v239 = vld [vmem:[#allocation8 + $0x48] sm:$0xff]
    %v240 = vld [vmem:[#allocation8 + $0x50] sm:$0xff]
    %v241 = vld [vmem:[#allocation8 + $0x58] sm:$0xff]
    %v242 = vld [vmem:[#allocation8 + $0x60] sm:$0xff]
    %v243 = vld [vmem:[#allocation8 + $0x68] sm:$0xff]
    %v244 = vld [vmem:[#allocation8 + $0x70] sm:$0xff]
    %v245 = vld [vmem:[#allocation8 + $0x78] sm:$0xff]
    %v246 = vld [vmem:[#allocation8 + $0x80] sm:$0xff]
    %v247 = vld [vmem:[#allocation8 + $0x88] sm:$0xff]
    %v248 = vld [vmem:[#allocation8 + $0x90] sm:$0xff]
    %v249 = vld [vmem:[#allocation8 + $0x98] sm:$0xff]
    %v250 = vld [vmem:[#allocation8 + $0xa0] sm:$0xff]
    %v251 = vld [vmem:[#allocation8 + $0xa8] sm:$0xff]
    %v252 = vld [vmem:[#allocation8 + $0xb0] sm:$0xff]
    %v253 = vld [vmem:[#allocation8 + $0xb8] sm:$0xff]
    %v254 = vld [vmem:[#allocation8 + $0xc0] sm:$0xff]
    %v255 = vld [vmem:[#allocation8 + $0xc8] sm:$0xff]
    %v256 = vld [vmem:[#allocation8 + $0xd0] sm:$0xff]
    %v257 = vld [vmem:[#allocation8 + $0xd8] sm:$0xff]
    %v258 = vld [vmem:[#allocation8 + $0xe0] sm:$0xff]
    %v259 = vld [vmem:[#allocation8 + $0xe8] sm:$0xff]
    %v260 = vld [vmem:[#allocation8 + $0xf0] sm:$0xff]
    %v261 = vld [vmem:[#allocation8 + $0xf8] sm:$0xff]
    %v262 = vld [vmem:[#allocation8 + $0x100] sm:$0xff]
    %v263 = vld [vmem:[#allocation8 + $0x108] sm:$0xff]
    %v264 = vld [vmem:[#allocation8 + $0x110] sm:$0xff]
    %v265 = vld [vmem:[#allocation8 + $0x118] sm:$0xff]
    %v266 = vld [vmem:[#allocation8 + $0x120] sm:$0xff]
    %v267 = vld [vmem:[#allocation8 + $0x128] sm:$0xff]
    %v268 = vld [vmem:[#allocation8 + $0x130] sm:$0xff]
    %v269 = vld [vmem:[#allocation8 + $0x138] sm:$0xff]
    %v270 = vld [vmem:[#allocation8 + $0x140] sm:$0xff]
    %v271 = vld [vmem:[#allocation8 + $0x148] sm:$0xff]
    %v272 = vld [vmem:[#allocation8 + $0x150] sm:$0xff]
    %v273 = vld [vmem:[#allocation8 + $0x158] sm:$0xff]
    %v274 = vld [vmem:[#allocation8 + $0x160] sm:$0xff]
    %v275 = vld [vmem:[#allocation8 + $0x168] sm:$0xff]
    %v276 = vld [vmem:[#allocation8 + $0x170] sm:$0xff]
    %v277 = vld [vmem:[#allocation8 + $0x178] sm:$0xff]
    %v278 = vld [vmem:[%s4] sm:$0x7]
    %v279 = vld [vmem:[#allocation2] sm:$0x3]
    %v280 = vld [vmem:[#allocation2 + $0x8] sm:$0x3]
    %v281 = vld [vmem:[#allocation2 + $0x10] sm:$0x3]
    %v283 = vperm.slane %v278, 0
    %v284 = vperm.slane %v278, 1
    %v285 = vperm.slane %v278, 2
    %289 = vmatpush.msra.mxu0 %v275
    %290 = vmatpush.msra.mxu0 %v272
    %291 = vmatpush.msra.mxu0 %v269
    %292 = vmatpush.msra.mxu0 %v266
    %293 = vmatpush.msra.mxu0 %v263
    %294 = vmatpush.msra.mxu0 %v260
    %295 = vmatpush.msra.mxu0 %v257
    %296 = vmatpush.msra.mxu0 %v254
    %297 = vmatpush.msra.mxu0 %v251
    %298 = vmatpush.msra.mxu0 %v248
    %299 = vmatpush.msra.mxu0 %v245
    %300 = vmatpush.msra.mxu0 %v242
    %301 = vmatpush.msra.mxu0 %v239
    %302 = vmatpush.msra.mxu0 %v236
    %303 = vmatpush.msra.mxu0 %v233
    %304 = vmatpush.msra.mxu0 %v230
    %305 = vmatmul.f32.gmra.mxu0 0.0
    %v306 = vpop.f32.mrf.mxu0
    %v307 = vadd.f32 %v283, %v306
    %308 = vdwg.mxu0
    %309 = vmatpush.msra.mxu0 %v276
    %310 = vmatpush.msra.mxu0 %v273
    %311 = vmatpush.msra.mxu0 %v270
    %312 = vmatpush.msra.mxu0 %v267
    %313 = vmatpush.msra.mxu0 %v264
    %314 = vmatpush.msra.mxu0 %v261
    %315 = vmatpush.msra.mxu0 %v258
    %316 = vmatpush.msra.mxu0 %v255
    %317 = vmatpush.msra.mxu0 %v252
    %318 = vmatpush.msra.mxu0 %v249
    %319 = vmatpush.msra.mxu0 %v246
    %320 = vmatpush.msra.mxu0 %v243
    %321 = vmatpush.msra.mxu0 %v240
    %322 = vmatpush.msra.mxu0 %v237
    %323 = vmatpush.msra.mxu0 %v234
    %324 = vmatpush.msra.mxu0 %v231
    %325 = vmatmul.f32.gmra.mxu0 0.0
    %v326 = vpop.f32.mrf.mxu0
    %v327 = vadd.f32 %v284, %v326
    %328 = vdwg.mxu0
    %329 = vmatpush.msra.mxu0 %v277
    %330 = vmatpush.msra.mxu0 %v274
    %331 = vmatpush.msra.mxu0 %v271
    %332 = vmatpush.msra.mxu0 %v268
    %333 = vmatpush.msra.mxu0 %v265
    %334 = vmatpush.msra.mxu0 %v262
    %335 = vmatpush.msra.mxu0 %v259
    %336 = vmatpush.msra.mxu0 %v256
    %337 = vmatpush.msra.mxu0 %v253
    %338 = vmatpush.msra.mxu0 %v250
    %339 = vmatpush.msra.mxu0 %v247
    %340 = vmatpush.msra.mxu0 %v244
    %341 = vmatpush.msra.mxu0 %v241
    %342 = vmatpush.msra.mxu0 %v238
    %343 = vmatpush.msra.mxu0 %v235
    %344 = vmatpush.msra.mxu0 %v232
    %345 = vmatmul.f32.gmra.mxu0 0.0
    %v346 = vpop.f32.mrf.mxu0
    %v347 = vadd.f32 %v285, %v346
    %348 = vdwg.mxu0
    %v349 = vadd.f32 %v279, %v307
    %v350 = vxor.u32 %v349, 2147483648
    %v351 = vmul.f32 %v350, 1.442695
    %v352 = vpow.pop %v351
    %v353 = vadd.f32 %v352, 1.0
    %v354 = vrcp.pop %v353
    %v355 = vmul.f32 %v353, %v354
    %v356 = vsub.f32 1.0, %v355
    %v357 = vmul.f32 %v354, %v356
    %v358 = vadd.f32 %v354, %v357
    %vm359 = vweird.f32 %v353
    %vm360 = vweird.f32 %v354
    %vm361 = vmor %vm359, %vm360
    %v362 = vsel %vm361, %v354, %v358
    %v363 = vand.u32 2147483647, %v353
    %vm364 = vcmp.eq.f32.partialorder %v363, 8.507059e+37
    %v365 = vand.u32 %v353, 2147483648
    %v366 = vor.u32 1.1754944e-38, %v365
    %v367 = vsel %vm364, %v366, %v362
    %v368 = vmul.f32 1.0, %v367
    %v369 = vadd.f32 %v280, %v327
    %v370 = vxor.u32 %v369, 2147483648
    %v371 = vmul.f32 %v370, 1.442695
    %v372 = vpow.pop %v371
    %v373 = vadd.f32 %v372, 1.0
    %v374 = vrcp.pop %v373
    %v375 = vmul.f32 %v373, %v374
    %v376 = vsub.f32 1.0, %v375
    %v377 = vmul.f32 %v374, %v376
    %v378 = vadd.f32 %v374, %v377
    %vm379 = vweird.f32 %v373
    %vm380 = vweird.f32 %v374
    %vm381 = vmor %vm379, %vm380
    %v382 = vsel %vm381, %v374, %v378
    %v383 = vand.u32 2147483647, %v373
    %vm384 = vcmp.eq.f32.partialorder %v383, 8.507059e+37
    %v385 = vand.u32 %v373, 2147483648
    %v386 = vor.u32 1.1754944e-38, %v385
    %v387 = vsel %vm384, %v386, %v382
    %v388 = vmul.f32 1.0, %v387
    %v389 = vmul.f32 %v368, %v347
    %v390 = vadd.f32 %v281, %v389
    %v391 = vtanh.pop %v390
    %v392 = vsub.f32 1.0, %v388
    %v393 = vmul.f32 %v392, %v391
    %v394 = vmul.f32 %v388, 0.0
    %v395 = vadd.f32 %v393, %v394
    %v396 = vld [vmem:[#allocation2] sm:$0xc]
    %v397 = vld [vmem:[#allocation2 + $0x8] sm:$0xc]
    %v398 = vld [vmem:[#allocation2 + $0x10] sm:$0xc]
    %399 = vmatpush.msra.mxu0 %v275
    %400 = vmatpush.msra.mxu0 %v272
    %401 = vmatpush.msra.mxu0 %v269
    %402 = vmatpush.msra.mxu0 %v266
    %403 = vmatpush.msra.mxu0 %v263
    %404 = vmatpush.msra.mxu0 %v260
    %405 = vmatpush.msra.mxu0 %v257
    %406 = vmatpush.msra.mxu0 %v254
    %407 = vmatpush.msra.mxu0 %v251
    %408 = vmatpush.msra.mxu0 %v248
    %409 = vmatpush.msra.mxu0 %v245
    %410 = vmatpush.msra.mxu0 %v242
    %411 = vmatpush.msra.mxu0 %v239
    %412 = vmatpush.msra.mxu0 %v236
    %413 = vmatpush.msra.mxu0 %v233
    %414 = vmatpush.msra.mxu0 %v230
    %415 = vmatmul.f32.gmra.mxu0 %v395
    %v416 = vpop.f32.mrf.mxu0
    %v417 = vadd.f32 %v283, %v416
    %418 = vdwg.mxu0
    %419 = vmatpush.msra.mxu0 %v276
    %420 = vmatpush.msra.mxu0 %v273
    %421 = vmatpush.msra.mxu0 %v270
    %422 = vmatpush.msra.mxu0 %v267
    %423 = vmatpush.msra.mxu0 %v264
    %424 = vmatpush.msra.mxu0 %v261
    %425 = vmatpush.msra.mxu0 %v258
    %426 = vmatpush.msra.mxu0 %v255
    %427 = vmatpush.msra.mxu0 %v252
    %428 = vmatpush.msra.mxu0 %v249
    %429 = vmatpush.msra.mxu0 %v246
    %430 = vmatpush.msra.mxu0 %v243
    %431 = vmatpush.msra.mxu0 %v240
    %432 = vmatpush.msra.mxu0 %v237
    %433 = vmatpush.msra.mxu0 %v234
    %434 = vmatpush.msra.mxu0 %v231
    %435 = vmatmul.f32.gmra.mxu0 %v395
    %v436 = vpop.f32.mrf.mxu0
    %v437 = vadd.f32 %v284, %v436
    %438 = vdwg.mxu0
    %439 = vmatpush.msra.mxu0 %v277
    %440 = vmatpush.msra.mxu0 %v274
    %441 = vmatpush.msra.mxu0 %v271
    %442 = vmatpush.msra.mxu0 %v268
    %443 = vmatpush.msra.mxu0 %v265
    %444 = vmatpush.msra.mxu0 %v262
    %445 = vmatpush.msra.mxu0 %v259
    %446 = vmatpush.msra.mxu0 %v256
    %447 = vmatpush.msra.mxu0 %v253
    %448 = vmatpush.msra.mxu0 %v250
    %449 = vmatpush.msra.mxu0 %v247
    %450 = vmatpush.msra.mxu0 %v244
    %451 = vmatpush.msra.mxu0 %v241
    %452 = vmatpush.msra.mxu0 %v238
    %453 = vmatpush.msra.mxu0 %v235
    %454 = vmatpush.msra.mxu0 %v232
    %455 = vmatmul.f32.gmra.mxu0 %v395
    %v456 = vpop.f32.mrf.mxu0
    %v457 = vadd.f32 %v285, %v456
    %458 = vdwg.mxu0
    %v460 = vrot.slane %v417, 6
    %v462 = vadd.f32 %v396, %v460
    %v463 = vxor.u32 %v462, 2147483648
    %v464 = vmul.f32 %v463, 1.442695
    %v465 = vpow.pop %v464
    %v466 = vadd.f32 %v465, 1.0
    %v467 = vrcp.pop %v466
    %v468 = vmul.f32 %v466, %v467
    %v469 = vsub.f32 1.0, %v468
    %v470 = vmul.f32 %v467, %v469
    %v471 = vadd.f32 %v467, %v470
    %vm472 = vweird.f32 %v466
    %vm473 = vweird.f32 %v467
    %vm474 = vmor %vm472, %vm473
    %v475 = vsel %vm474, %v467, %v471
    %v476 = vand.u32 2147483647, %v466
    %vm477 = vcmp.eq.f32.partialorder %v476, 8.507059e+37
    %v478 = vand.u32 %v466, 2147483648
    %v479 = vor.u32 1.1754944e-38, %v478
    %v480 = vsel %vm477, %v479, %v475
    %v481 = vmul.f32 1.0, %v480
    %v483 = vrot.slane %v437, 6
    %v485 = vadd.f32 %v397, %v483
    %v486 = vxor.u32 %v485, 2147483648
    %v487 = vmul.f32 %v486, 1.442695
    %v488 = vpow.pop %v487
    %v489 = vadd.f32 %v488, 1.0
    %v490 = vrcp.pop %v489
    %v491 = vmul.f32 %v489, %v490
    %v492 = vsub.f32 1.0, %v491
    %v493 = vmul.f32 %v490, %v492
    %v494 = vadd.f32 %v490, %v493
    %vm495 = vweird.f32 %v489
    %vm496 = vweird.f32 %v490
    %vm497 = vmor %vm495, %vm496
    %v498 = vsel %vm497, %v490, %v494
    %v499 = vand.u32 2147483647, %v489
    %vm500 = vcmp.eq.f32.partialorder %v499, 8.507059e+37
    %v501 = vand.u32 %v489, 2147483648
    %v502 = vor.u32 1.1754944e-38, %v501
    %v503 = vsel %vm500, %v502, %v498
    %v504 = vmul.f32 1.0, %v503
    %v506 = vrot.slane %v457, 6
    %v508 = vmul.f32 %v481, %v506
    %v509 = vadd.f32 %v398, %v508
    %v510 = vtanh.pop %v509
    %v511 = vsub.f32 1.0, %v504
    %v512 = vmul.f32 %v511, %v510
    %v514 = vrot.slane %v395, 6
    %v516 = vmul.f32 %v504, %v514
    %v517 = vadd.f32 %v512, %v516
    %v518 = vld [vmem:[#allocation2] sm:$0x30]
    %v519 = vld [vmem:[#allocation2 + $0x8] sm:$0x30]
    %v520 = vld [vmem:[#allocation2 + $0x10] sm:$0x30]
    %v522 = vrot.slane %v517, 2
    %524 = vmatpush.msra.mxu0 %v275
    %525 = vmatpush.msra.mxu0 %v272
    %526 = vmatpush.msra.mxu0 %v269
    %527 = vmatpush.msra.mxu0 %v266
    %528 = vmatpush.msra.mxu0 %v263
    %529 = vmatpush.msra.mxu0 %v260
    %530 = vmatpush.msra.mxu0 %v257
    %531 = vmatpush.msra.mxu0 %v254
    %532 = vmatpush.msra.mxu0 %v251
    %533 = vmatpush.msra.mxu0 %v248
    %534 = vmatpush.msra.mxu0 %v245
    %535 = vmatpush.msra.mxu0 %v242
    %536 = vmatpush.msra.mxu0 %v239
    %537 = vmatpush.msra.mxu0 %v236
    %538 = vmatpush.msra.mxu0 %v233
    %539 = vmatpush.msra.mxu0 %v230
    %540 = vmatmul.f32.gmra.mxu0 %v522
    %v541 = vpop.f32.mrf.mxu0
    %v542 = vadd.f32 %v283, %v541
    %543 = vdwg.mxu0
    %544 = vmatpush.msra.mxu0 %v276
    %545 = vmatpush.msra.mxu0 %v273
    %546 = vmatpush.msra.mxu0 %v270
    %547 = vmatpush.msra.mxu0 %v267
    %548 = vmatpush.msra.mxu0 %v264
    %549 = vmatpush.msra.mxu0 %v261
    %550 = vmatpush.msra.mxu0 %v258
    %551 = vmatpush.msra.mxu0 %v255
    %552 = vmatpush.msra.mxu0 %v252
    %553 = vmatpush.msra.mxu0 %v249
    %554 = vmatpush.msra.mxu0 %v246
    %555 = vmatpush.msra.mxu0 %v243
    %556 = vmatpush.msra.mxu0 %v240
    %557 = vmatpush.msra.mxu0 %v237
    %558 = vmatpush.msra.mxu0 %v234
    %559 = vmatpush.msra.mxu0 %v231
    %560 = vmatmul.f32.gmra.mxu0 %v522
    %v561 = vpop.f32.mrf.mxu0
    %v562 = vadd.f32 %v284, %v561
    %563 = vdwg.mxu0
    %564 = vmatpush.msra.mxu0 %v277
    %565 = vmatpush.msra.mxu0 %v274
    %566 = vmatpush.msra.mxu0 %v271
    %567 = vmatpush.msra.mxu0 %v268
    %568 = vmatpush.msra.mxu0 %v265
    %569 = vmatpush.msra.mxu0 %v262
    %570 = vmatpush.msra.mxu0 %v259
    %571 = vmatpush.msra.mxu0 %v256
    %572 = vmatpush.msra.mxu0 %v253
    %573 = vmatpush.msra.mxu0 %v250
    %574 = vmatpush.msra.mxu0 %v247
    %575 = vmatpush.msra.mxu0 %v244
    %576 = vmatpush.msra.mxu0 %v241
    %577 = vmatpush.msra.mxu0 %v238
    %578 = vmatpush.msra.mxu0 %v235
    %579 = vmatpush.msra.mxu0 %v232
    %580 = vmatmul.f32.gmra.mxu0 %v522
    %v581 = vpop.f32.mrf.mxu0
    %v582 = vadd.f32 %v285, %v581
    %583 = vdwg.mxu0
    %v585 = vrot.slane %v542, 4
    %v587 = vadd.f32 %v518, %v585
    %v588 = vxor.u32 %v587, 2147483648
    %v589 = vmul.f32 %v588, 1.442695
    %v590 = vpow.pop %v589
    %v591 = vadd.f32 %v590, 1.0
    %v592 = vrcp.pop %v591
    %v593 = vmul.f32 %v591, %v592
    %v594 = vsub.f32 1.0, %v593
    %v595 = vmul.f32 %v592, %v594
    %v596 = vadd.f32 %v592, %v595
    %vm597 = vweird.f32 %v591
    %vm598 = vweird.f32 %v592
    %vm599 = vmor %vm597, %vm598
    %v600 = vsel %vm599, %v592, %v596
    %v601 = vand.u32 2147483647, %v591
    %vm602 = vcmp.eq.f32.partialorder %v601, 8.507059e+37
    %v603 = vand.u32 %v591, 2147483648
    %v604 = vor.u32 1.1754944e-38, %v603
    %v605 = vsel %vm602, %v604, %v600
    %v606 = vmul.f32 1.0, %v605
    %v608 = vrot.slane %v562, 4
    %v610 = vadd.f32 %v519, %v608
    %v611 = vxor.u32 %v610, 2147483648
    %v612 = vmul.f32 %v611, 1.442695
    %v613 = vpow.pop %v612
    %v614 = vadd.f32 %v613, 1.0
    %v615 = vrcp.pop %v614
    %v616 = vmul.f32 %v614, %v615
    %v617 = vsub.f32 1.0, %v616
    %v618 = vmul.f32 %v615, %v617
    %v619 = vadd.f32 %v615, %v618
    %vm620 = vweird.f32 %v614
    %vm621 = vweird.f32 %v615
    %vm622 = vmor %vm620, %vm621
    %v623 = vsel %vm622, %v615, %v619
    %v624 = vand.u32 2147483647, %v614
    %vm625 = vcmp.eq.f32.partialorder %v624, 8.507059e+37
    %v626 = vand.u32 %v614, 2147483648
    %v627 = vor.u32 1.1754944e-38, %v626
    %v628 = vsel %vm625, %v627, %v623
    %v629 = vmul.f32 1.0, %v628
    %v631 = vrot.slane %v582, 4
    %v633 = vmul.f32 %v606, %v631
    %v634 = vadd.f32 %v520, %v633
    %v635 = vtanh.pop %v634
    %v636 = vsub.f32 1.0, %v629
    %v637 = vmul.f32 %v636, %v635
    %v638 = vrot.slane %v517, 6
    %v640 = vmul.f32 %v629, %v638
    %v641 = vadd.f32 %v637, %v640
    %v642 = vld [vmem:[#allocation2] sm:$0xc0]
    %v643 = vld [vmem:[#allocation2 + $0x8] sm:$0xc0]
    %v644 = vld [vmem:[#allocation2 + $0x10] sm:$0xc0]
    %v646 = vrot.slane %v641, 4
    %648 = vmatpush.msra.mxu0 %v275
    %649 = vmatpush.msra.mxu0 %v272
    %650 = vmatpush.msra.mxu0 %v269
    %651 = vmatpush.msra.mxu0 %v266
    %652 = vmatpush.msra.mxu0 %v263
    %653 = vmatpush.msra.mxu0 %v260
    %654 = vmatpush.msra.mxu0 %v257
    %655 = vmatpush.msra.mxu0 %v254
    %656 = vmatpush.msra.mxu0 %v251
    %657 = vmatpush.msra.mxu0 %v248
    %658 = vmatpush.msra.mxu0 %v245
    %659 = vmatpush.msra.mxu0 %v242
    %660 = vmatpush.msra.mxu0 %v239
    %661 = vmatpush.msra.mxu0 %v236
    %662 = vmatpush.msra.mxu0 %v233
    %663 = vmatpush.msra.mxu0 %v230
    %664 = vmatmul.f32.gmra.mxu0 %v646
    %v665 = vpop.f32.mrf.mxu0
    %v666 = vadd.f32 %v283, %v665
    %667 = vdwg.mxu0
    %668 = vmatpush.msra.mxu0 %v276
    %669 = vmatpush.msra.mxu0 %v273
    %670 = vmatpush.msra.mxu0 %v270
    %671 = vmatpush.msra.mxu0 %v267
    %672 = vmatpush.msra.mxu0 %v264
    %673 = vmatpush.msra.mxu0 %v261
    %674 = vmatpush.msra.mxu0 %v258
    %675 = vmatpush.msra.mxu0 %v255
    %676 = vmatpush.msra.mxu0 %v252
    %677 = vmatpush.msra.mxu0 %v249
    %678 = vmatpush.msra.mxu0 %v246
    %679 = vmatpush.msra.mxu0 %v243
    %680 = vmatpush.msra.mxu0 %v240
    %681 = vmatpush.msra.mxu0 %v237
    %682 = vmatpush.msra.mxu0 %v234
    %683 = vmatpush.msra.mxu0 %v231
    %684 = vmatmul.f32.gmra.mxu0 %v646
    %v685 = vpop.f32.mrf.mxu0
    %v686 = vadd.f32 %v284, %v685
    %687 = vdwg.mxu0
    %688 = vmatpush.msra.mxu0 %v277
    %689 = vmatpush.msra.mxu0 %v274
    %690 = vmatpush.msra.mxu0 %v271
    %691 = vmatpush.msra.mxu0 %v268
    %692 = vmatpush.msra.mxu0 %v265
    %693 = vmatpush.msra.mxu0 %v262
    %694 = vmatpush.msra.mxu0 %v259
    %695 = vmatpush.msra.mxu0 %v256
    %696 = vmatpush.msra.mxu0 %v253
    %697 = vmatpush.msra.mxu0 %v250
    %698 = vmatpush.msra.mxu0 %v247
    %699 = vmatpush.msra.mxu0 %v244
    %700 = vmatpush.msra.mxu0 %v241
    %701 = vmatpush.msra.mxu0 %v238
    %702 = vmatpush.msra.mxu0 %v235
    %703 = vmatpush.msra.mxu0 %v232
    %704 = vmatmul.f32.gmra.mxu0 %v646
    %v705 = vpop.f32.mrf.mxu0
    %v706 = vadd.f32 %v285, %v705
    %707 = vdwg.mxu0
    %v709 = vrot.slane %v666, 2
    %v711 = vadd.f32 %v642, %v709
    %v712 = vxor.u32 %v711, 2147483648
    %v713 = vmul.f32 %v712, 1.442695
    %v714 = vpow.pop %v713
    %v715 = vadd.f32 %v714, 1.0
    %v716 = vrcp.pop %v715
    %v717 = vmul.f32 %v715, %v716
    %v718 = vsub.f32 1.0, %v717
    %v719 = vmul.f32 %v716, %v718
    %v720 = vadd.f32 %v716, %v719
    %vm721 = vweird.f32 %v715
    %vm722 = vweird.f32 %v716
    %vm723 = vmor %vm721, %vm722
    %v724 = vsel %vm723, %v716, %v720
    %v725 = vand.u32 2147483647, %v715
    %vm726 = vcmp.eq.f32.partialorder %v725, 8.507059e+37
    %v727 = vand.u32 %v715, 2147483648
    %v728 = vor.u32 1.1754944e-38, %v727
    %v729 = vsel %vm726, %v728, %v724
    %v730 = vmul.f32 1.0, %v729
    %v732 = vrot.slane %v686, 2
    %v734 = vadd.f32 %v643, %v732
    %v735 = vxor.u32 %v734, 2147483648
    %v736 = vmul.f32 %v735, 1.442695
    %v737 = vpow.pop %v736
    %v738 = vadd.f32 %v737, 1.0
    %v739 = vrcp.pop %v738
    %v740 = vmul.f32 %v738, %v739
    %v741 = vsub.f32 1.0, %v740
    %v742 = vmul.f32 %v739, %v741
    %v743 = vadd.f32 %v739, %v742
    %vm744 = vweird.f32 %v738
    %vm745 = vweird.f32 %v739
    %vm746 = vmor %vm744, %vm745
    %v747 = vsel %vm746, %v739, %v743
    %v748 = vand.u32 2147483647, %v738
    %vm749 = vcmp.eq.f32.partialorder %v748, 8.507059e+37
    %v750 = vand.u32 %v738, 2147483648
    %v751 = vor.u32 1.1754944e-38, %v750
    %v752 = vsel %vm749, %v751, %v747
    %v753 = vmul.f32 1.0, %v752
    %v755 = vrot.slane %v706, 2
    %v757 = vmul.f32 %v730, %v755
    %v758 = vadd.f32 %v644, %v757
    %v759 = vtanh.pop %v758
    %v760 = vsub.f32 1.0, %v753
    %v761 = vmul.f32 %v760, %v759
    %v762 = vrot.slane %v641, 6
    %v764 = vmul.f32 %v753, %v762
    %v765 = vadd.f32 %v761, %v764
    %v766 = vld [vmem:[#allocation2 + $0x18] sm:$0x3]
    %v767 = vld [vmem:[#allocation2 + $0x20] sm:$0x3]
    %v768 = vld [vmem:[#allocation2 + $0x28] sm:$0x3]
    %v770 = vrot.slane %v765, 6
    %772 = vmatpush.msra.mxu0 %v275
    %773 = vmatpush.msra.mxu0 %v272
    %774 = vmatpush.msra.mxu0 %v269
    %775 = vmatpush.msra.mxu0 %v266
    %776 = vmatpush.msra.mxu0 %v263
    %777 = vmatpush.msra.mxu0 %v260
    %778 = vmatpush.msra.mxu0 %v257
    %779 = vmatpush.msra.mxu0 %v254
    %780 = vmatpush.msra.mxu0 %v251
    %781 = vmatpush.msra.mxu0 %v248
    %782 = vmatpush.msra.mxu0 %v245
    %783 = vmatpush.msra.mxu0 %v242
    %784 = vmatpush.msra.mxu0 %v239
    %785 = vmatpush.msra.mxu0 %v236
    %786 = vmatpush.msra.mxu0 %v233
    %787 = vmatpush.msra.mxu0 %v230
    %788 = vmatmul.f32.gmra.mxu0 %v770
    %v789 = vpop.f32.mrf.mxu0
    %v790 = vadd.f32 %v283, %v789
    %791 = vdwg.mxu0
    %792 = vmatpush.msra.mxu0 %v276
    %793 = vmatpush.msra.mxu0 %v273
    %794 = vmatpush.msra.mxu0 %v270
    %795 = vmatpush.msra.mxu0 %v267
    %796 = vmatpush.msra.mxu0 %v264
    %797 = vmatpush.msra.mxu0 %v261
    %798 = vmatpush.msra.mxu0 %v258
    %799 = vmatpush.msra.mxu0 %v255
    %800 = vmatpush.msra.mxu0 %v252
    %801 = vmatpush.msra.mxu0 %v249
    %802 = vmatpush.msra.mxu0 %v246
    %803 = vmatpush.msra.mxu0 %v243
    %804 = vmatpush.msra.mxu0 %v240
    %805 = vmatpush.msra.mxu0 %v237
    %806 = vmatpush.msra.mxu0 %v234
    %807 = vmatpush.msra.mxu0 %v231
    %808 = vmatmul.f32.gmra.mxu0 %v770
    %v809 = vpop.f32.mrf.mxu0
    %v810 = vadd.f32 %v284, %v809
    %811 = vdwg.mxu0
    %812 = vmatpush.msra.mxu0 %v277
    %813 = vmatpush.msra.mxu0 %v274
    %814 = vmatpush.msra.mxu0 %v271
    %815 = vmatpush.msra.mxu0 %v268
    %816 = vmatpush.msra.mxu0 %v265
    %817 = vmatpush.msra.mxu0 %v262
    %818 = vmatpush.msra.mxu0 %v259
    %819 = vmatpush.msra.mxu0 %v256
    %820 = vmatpush.msra.mxu0 %v253
    %821 = vmatpush.msra.mxu0 %v250
    %822 = vmatpush.msra.mxu0 %v247
    %823 = vmatpush.msra.mxu0 %v244
    %824 = vmatpush.msra.mxu0 %v241
    %825 = vmatpush.msra.mxu0 %v238
    %826 = vmatpush.msra.mxu0 %v235
    %827 = vmatpush.msra.mxu0 %v232
    %828 = vmatmul.f32.gmra.mxu0 %v770
    %v829 = vpop.f32.mrf.mxu0
    %v830 = vadd.f32 %v285, %v829
    %831 = vdwg.mxu0
    %v832 = vadd.f32 %v766, %v790
    %v833 = vxor.u32 %v832, 2147483648
    %v834 = vmul.f32 %v833, 1.442695
    %v835 = vpow.pop %v834
    %v836 = vadd.f32 %v835, 1.0
    %v837 = vrcp.pop %v836
    %v838 = vmul.f32 %v836, %v837
    %v839 = vsub.f32 1.0, %v838
    %v840 = vmul.f32 %v837, %v839
    %v841 = vadd.f32 %v837, %v840
    %vm842 = vweird.f32 %v836
    %vm843 = vweird.f32 %v837
    %vm844 = vmor %vm842, %vm843
    %v845 = vsel %vm844, %v837, %v841
    %v846 = vand.u32 2147483647, %v836
    %vm847 = vcmp.eq.f32.partialorder %v846, 8.507059e+37
    %v848 = vand.u32 %v836, 2147483648
    %v849 = vor.u32 1.1754944e-38, %v848
    %v850 = vsel %vm847, %v849, %v845
    %v851 = vmul.f32 1.0, %v850
    %v852 = vadd.f32 %v767, %v810
    %v853 = vxor.u32 %v852, 2147483648
    %v854 = vmul.f32 %v853, 1.442695
    %v855 = vpow.pop %v854
    %v856 = vadd.f32 %v855, 1.0
    %v857 = vrcp.pop %v856
    %v858 = vmul.f32 %v856, %v857
    %v859 = vsub.f32 1.0, %v858
    %v860 = vmul.f32 %v857, %v859
    %v861 = vadd.f32 %v857, %v860
    %vm862 = vweird.f32 %v856
    %vm863 = vweird.f32 %v857
    %vm864 = vmor %vm862, %vm863
    %v865 = vsel %vm864, %v857, %v861
    %v866 = vand.u32 2147483647, %v856
    %vm867 = vcmp.eq.f32.partialorder %v866, 8.507059e+37
    %v868 = vand.u32 %v856, 2147483648
    %v869 = vor.u32 1.1754944e-38, %v868
    %v870 = vsel %vm867, %v869, %v865
    %v871 = vmul.f32 1.0, %v870
    %v872 = vmul.f32 %v851, %v830
    %v873 = vadd.f32 %v768, %v872
    %v874 = vtanh.pop %v873
    %v875 = vsub.f32 1.0, %v871
    %v876 = vmul.f32 %v875, %v874
    %v877 = vmul.f32 %v871, %v770
    %v878 = vadd.f32 %v876, %v877
    %v879 = vld [vmem:[#allocation2 + $0x18] sm:$0xc]
    %v880 = vld [vmem:[#allocation2 + $0x20] sm:$0xc]
    %v881 = vld [vmem:[#allocation2 + $0x28] sm:$0xc]
    %882 = vmatpush.msra.mxu0 %v275
    %883 = vmatpush.msra.mxu0 %v272
    %884 = vmatpush.msra.mxu0 %v269
    %885 = vmatpush.msra.mxu0 %v266
    %886 = vmatpush.msra.mxu0 %v263
    %887 = vmatpush.msra.mxu0 %v260
    %888 = vmatpush.msra.mxu0 %v257
    %889 = vmatpush.msra.mxu0 %v254
    %890 = vmatpush.msra.mxu0 %v251
    %891 = vmatpush.msra.mxu0 %v248
    %892 = vmatpush.msra.mxu0 %v245
    %893 = vmatpush.msra.mxu0 %v242
    %894 = vmatpush.msra.mxu0 %v239
    %895 = vmatpush.msra.mxu0 %v236
    %896 = vmatpush.msra.mxu0 %v233
    %897 = vmatpush.msra.mxu0 %v230
    %898 = vmatmul.f32.gmra.mxu0 %v878
    %v899 = vpop.f32.mrf.mxu0
    %v900 = vadd.f32 %v283, %v899
    %901 = vdwg.mxu0
    %902 = vmatpush.msra.mxu0 %v276
    %903 = vmatpush.msra.mxu0 %v273
    %904 = vmatpush.msra.mxu0 %v270
    %905 = vmatpush.msra.mxu0 %v267
    %906 = vmatpush.msra.mxu0 %v264
    %907 = vmatpush.msra.mxu0 %v261
    %908 = vmatpush.msra.mxu0 %v258
    %909 = vmatpush.msra.mxu0 %v255
    %910 = vmatpush.msra.mxu0 %v252
    %911 = vmatpush.msra.mxu0 %v249
    %912 = vmatpush.msra.mxu0 %v246
    %913 = vmatpush.msra.mxu0 %v243
    %914 = vmatpush.msra.mxu0 %v240
    %915 = vmatpush.msra.mxu0 %v237
    %916 = vmatpush.msra.mxu0 %v234
    %917 = vmatpush.msra.mxu0 %v231
    %918 = vmatmul.f32.gmra.mxu0 %v878
    %v919 = vpop.f32.mrf.mxu0
    %v920 = vadd.f32 %v284, %v919
    %921 = vdwg.mxu0
    %922 = vmatpush.msra.mxu0 %v277
    %923 = vmatpush.msra.mxu0 %v274
    %924 = vmatpush.msra.mxu0 %v271
    %925 = vmatpush.msra.mxu0 %v268
    %926 = vmatpush.msra.mxu0 %v265
    %927 = vmatpush.msra.mxu0 %v262
    %928 = vmatpush.msra.mxu0 %v259
    %929 = vmatpush.msra.mxu0 %v256
    %930 = vmatpush.msra.mxu0 %v253
    %931 = vmatpush.msra.mxu0 %v250
    %932 = vmatpush.msra.mxu0 %v247
    %933 = vmatpush.msra.mxu0 %v244
    %934 = vmatpush.msra.mxu0 %v241
    %935 = vmatpush.msra.mxu0 %v238
    %936 = vmatpush.msra.mxu0 %v235
    %937 = vmatpush.msra.mxu0 %v232
    %938 = vmatmul.f32.gmra.mxu0 %v878
    %v939 = vpop.f32.mrf.mxu0
    %v940 = vadd.f32 %v285, %v939
    %941 = vdwg.mxu0
    %v943 = vrot.slane %v900, 6
    %v945 = vadd.f32 %v879, %v943
    %v946 = vxor.u32 %v945, 2147483648
    %v947 = vmul.f32 %v946, 1.442695
    %v948 = vpow.pop %v947
    %v949 = vadd.f32 %v948, 1.0
    %v950 = vrcp.pop %v949
    %v951 = vmul.f32 %v949, %v950
    %v952 = vsub.f32 1.0, %v951
    %v953 = vmul.f32 %v950, %v952
    %v954 = vadd.f32 %v950, %v953
    %vm955 = vweird.f32 %v949
    %vm956 = vweird.f32 %v950
    %vm957 = vmor %vm955, %vm956
    %v958 = vsel %vm957, %v950, %v954
    %v959 = vand.u32 2147483647, %v949
    %vm960 = vcmp.eq.f32.partialorder %v959, 8.507059e+37
    %v961 = vand.u32 %v949, 2147483648
    %v962 = vor.u32 1.1754944e-38, %v961
    %v963 = vsel %vm960, %v962, %v958
    %v964 = vmul.f32 1.0, %v963
    %v966 = vrot.slane %v920, 6
    %v968 = vadd.f32 %v880, %v966
    %v969 = vxor.u32 %v968, 2147483648
    %v970 = vmul.f32 %v969, 1.442695
    %v971 = vpow.pop %v970
    %v972 = vadd.f32 %v971, 1.0
    %v973 = vrcp.pop %v972
    %v974 = vmul.f32 %v972, %v973
    %v975 = vsub.f32 1.0, %v974
    %v976 = vmul.f32 %v973, %v975
    %v977 = vadd.f32 %v973, %v976
    %vm978 = vweird.f32 %v972
    %vm979 = vweird.f32 %v973
    %vm980 = vmor %vm978, %vm979
    %v981 = vsel %vm980, %v973, %v977
    %v982 = vand.u32 2147483647, %v972
    %vm983 = vcmp.eq.f32.partialorder %v982, 8.507059e+37
    %v984 = vand.u32 %v972, 2147483648
    %v985 = vor.u32 1.1754944e-38, %v984
    %v986 = vsel %vm983, %v985, %v981
    %v987 = vmul.f32 1.0, %v986
    %v989 = vrot.slane %v940, 6
    %v991 = vmul.f32 %v964, %v989
    %v992 = vadd.f32 %v881, %v991
    %v993 = vtanh.pop %v992
    %v994 = vsub.f32 1.0, %v987
    %v995 = vmul.f32 %v994, %v993
    %v997 = vrot.slane %v878, 6
    %v999 = vmul.f32 %v987, %v997
    %v1000 = vadd.f32 %v995, %v999
    %v1001 = vld [vmem:[#allocation2 + $0x18] sm:$0x30]
    %v1002 = vld [vmem:[#allocation2 + $0x20] sm:$0x30]
    %v1003 = vld [vmem:[#allocation2 + $0x28] sm:$0x30]
    %v1005 = vrot.slane %v1000, 2
    %1007 = vmatpush.msra.mxu0 %v275
    %1008 = vmatpush.msra.mxu0 %v272
    %1009 = vmatpush.msra.mxu0 %v269
    %1010 = vmatpush.msra.mxu0 %v266
    %1011 = vmatpush.msra.mxu0 %v263
    %1012 = vmatpush.msra.mxu0 %v260
    %1013 = vmatpush.msra.mxu0 %v257
    %1014 = vmatpush.msra.mxu0 %v254
    %1015 = vmatpush.msra.mxu0 %v251
    %1016 = vmatpush.msra.mxu0 %v248
    %1017 = vmatpush.msra.mxu0 %v245
    %1018 = vmatpush.msra.mxu0 %v242
    %1019 = vmatpush.msra.mxu0 %v239
    %1020 = vmatpush.msra.mxu0 %v236
    %1021 = vmatpush.msra.mxu0 %v233
    %1022 = vmatpush.msra.mxu0 %v230
    %1023 = vmatmul.f32.gmra.mxu0 %v1005
    %v1024 = vpop.f32.mrf.mxu0
    %v1025 = vadd.f32 %v283, %v1024
    %1026 = vdwg.mxu0
    %1027 = vmatpush.msra.mxu0 %v276
    %1028 = vmatpush.msra.mxu0 %v273
    %1029 = vmatpush.msra.mxu0 %v270
    %1030 = vmatpush.msra.mxu0 %v267
    %1031 = vmatpush.msra.mxu0 %v264
    %1032 = vmatpush.msra.mxu0 %v261
    %1033 = vmatpush.msra.mxu0 %v258
    %1034 = vmatpush.msra.mxu0 %v255
    %1035 = vmatpush.msra.mxu0 %v252
    %1036 = vmatpush.msra.mxu0 %v249
    %1037 = vmatpush.msra.mxu0 %v246
    %1038 = vmatpush.msra.mxu0 %v243
    %1039 = vmatpush.msra.mxu0 %v240
    %1040 = vmatpush.msra.mxu0 %v237
    %1041 = vmatpush.msra.mxu0 %v234
    %1042 = vmatpush.msra.mxu0 %v231
    %1043 = vmatmul.f32.gmra.mxu0 %v1005
    %v1044 = vpop.f32.mrf.mxu0
    %v1045 = vadd.f32 %v284, %v1044
    %1046 = vdwg.mxu0
    %1047 = vmatpush.msra.mxu0 %v277
    %1048 = vmatpush.msra.mxu0 %v274
    %1049 = vmatpush.msra.mxu0 %v271
    %1050 = vmatpush.msra.mxu0 %v268
    %1051 = vmatpush.msra.mxu0 %v265
    %1052 = vmatpush.msra.mxu0 %v262
    %1053 = vmatpush.msra.mxu0 %v259
    %1054 = vmatpush.msra.mxu0 %v256
    %1055 = vmatpush.msra.mxu0 %v253
    %1056 = vmatpush.msra.mxu0 %v250
    %1057 = vmatpush.msra.mxu0 %v247
    %1058 = vmatpush.msra.mxu0 %v244
    %1059 = vmatpush.msra.mxu0 %v241
    %1060 = vmatpush.msra.mxu0 %v238
    %1061 = vmatpush.msra.mxu0 %v235
    %1062 = vmatpush.msra.mxu0 %v232
    %1063 = vmatmul.f32.gmra.mxu0 %v1005
    %v1064 = vpop.f32.mrf.mxu0
    %v1065 = vadd.f32 %v285, %v1064
    %1066 = vdwg.mxu0
    %v1068 = vrot.slane %v1025, 4
    %v1070 = vadd.f32 %v1001, %v1068
    %v1071 = vxor.u32 %v1070, 2147483648
    %v1072 = vmul.f32 %v1071, 1.442695
    %v1073 = vpow.pop %v1072
    %v1074 = vadd.f32 %v1073, 1.0
    %v1075 = vrcp.pop %v1074
    %v1076 = vmul.f32 %v1074, %v1075
    %v1077 = vsub.f32 1.0, %v1076
    %v1078 = vmul.f32 %v1075, %v1077
    %v1079 = vadd.f32 %v1075, %v1078
    %vm1080 = vweird.f32 %v1074
    %vm1081 = vweird.f32 %v1075
    %vm1082 = vmor %vm1080, %vm1081
    %v1083 = vsel %vm1082, %v1075, %v1079
    %v1084 = vand.u32 2147483647, %v1074
    %vm1085 = vcmp.eq.f32.partialorder %v1084, 8.507059e+37
    %v1086 = vand.u32 %v1074, 2147483648
    %v1087 = vor.u32 1.1754944e-38, %v1086
    %v1088 = vsel %vm1085, %v1087, %v1083
    %v1089 = vmul.f32 1.0, %v1088
    %v1091 = vrot.slane %v1045, 4
    %v1093 = vadd.f32 %v1002, %v1091
    %v1094 = vxor.u32 %v1093, 2147483648
    %v1095 = vmul.f32 %v1094, 1.442695
    %v1096 = vpow.pop %v1095
    %v1097 = vadd.f32 %v1096, 1.0
    %v1098 = vrcp.pop %v1097
    %v1099 = vmul.f32 %v1097, %v1098
    %v1100 = vsub.f32 1.0, %v1099
    %v1101 = vmul.f32 %v1098, %v1100
    %v1102 = vadd.f32 %v1098, %v1101
    %vm1103 = vweird.f32 %v1097
    %vm1104 = vweird.f32 %v1098
    %vm1105 = vmor %vm1103, %vm1104
    %v1106 = vsel %vm1105, %v1098, %v1102
    %v1107 = vand.u32 2147483647, %v1097
    %vm1108 = vcmp.eq.f32.partialorder %v1107, 8.507059e+37
    %v1109 = vand.u32 %v1097, 2147483648
    %v1110 = vor.u32 1.1754944e-38, %v1109
    %v1111 = vsel %vm1108, %v1110, %v1106
    %v1112 = vmul.f32 1.0, %v1111
    %v1114 = vrot.slane %v1065, 4
    %v1116 = vmul.f32 %v1089, %v1114
    %v1117 = vadd.f32 %v1003, %v1116
    %v1118 = vtanh.pop %v1117
    %v1119 = vsub.f32 1.0, %v1112
    %v1120 = vmul.f32 %v1119, %v1118
    %v1121 = vrot.slane %v1000, 6
    %v1123 = vmul.f32 %v1112, %v1121
    %v1124 = vadd.f32 %v1120, %v1123
    %v1125 = vld [vmem:[#allocation2 + $0x18] sm:$0xc0]
    %v1126 = vld [vmem:[#allocation2 + $0x20] sm:$0xc0]
    %v1127 = vld [vmem:[#allocation2 + $0x28] sm:$0xc0]
    %v1129 = vrot.slane %v1124, 4
    %1131 = vmatpush.msra.mxu0 %v275
    %1132 = vmatpush.msra.mxu0 %v272
    %1133 = vmatpush.msra.mxu0 %v269
    %1134 = vmatpush.msra.mxu0 %v266
    %1135 = vmatpush.msra.mxu0 %v263
    %1136 = vmatpush.msra.mxu0 %v260
    %1137 = vmatpush.msra.mxu0 %v257
    %1138 = vmatpush.msra.mxu0 %v254
    %1139 = vmatpush.msra.mxu0 %v251
    %1140 = vmatpush.msra.mxu0 %v248
    %1141 = vmatpush.msra.mxu0 %v245
    %1142 = vmatpush.msra.mxu0 %v242
    %1143 = vmatpush.msra.mxu0 %v239
    %1144 = vmatpush.msra.mxu0 %v236
    %1145 = vmatpush.msra.mxu0 %v233
    %1146 = vmatpush.msra.mxu0 %v230
    %1147 = vmatmul.f32.gmra.mxu0 %v1129
    %v1148 = vpop.f32.mrf.mxu0
    %v1149 = vadd.f32 %v283, %v1148
    %1150 = vdwg.mxu0
    %1151 = vmatpush.msra.mxu0 %v276
    %1152 = vmatpush.msra.mxu0 %v273
    %1153 = vmatpush.msra.mxu0 %v270
    %1154 = vmatpush.msra.mxu0 %v267
    %1155 = vmatpush.msra.mxu0 %v264
    %1156 = vmatpush.msra.mxu0 %v261
    %1157 = vmatpush.msra.mxu0 %v258
    %1158 = vmatpush.msra.mxu0 %v255
    %1159 = vmatpush.msra.mxu0 %v252
    %1160 = vmatpush.msra.mxu0 %v249
    %1161 = vmatpush.msra.mxu0 %v246
    %1162 = vmatpush.msra.mxu0 %v243
    %1163 = vmatpush.msra.mxu0 %v240
    %1164 = vmatpush.msra.mxu0 %v237
    %1165 = vmatpush.msra.mxu0 %v234
    %1166 = vmatpush.msra.mxu0 %v231
    %1167 = vmatmul.f32.gmra.mxu0 %v1129
    %v1168 = vpop.f32.mrf.mxu0
    %v1169 = vadd.f32 %v284, %v1168
    %1170 = vdwg.mxu0
    %1171 = vmatpush.msra.mxu0 %v277
    %1172 = vmatpush.msra.mxu0 %v274
    %1173 = vmatpush.msra.mxu0 %v271
    %1174 = vmatpush.msra.mxu0 %v268
    %1175 = vmatpush.msra.mxu0 %v265
    %1176 = vmatpush.msra.mxu0 %v262
    %1177 = vmatpush.msra.mxu0 %v259
    %1178 = vmatpush.msra.mxu0 %v256
    %1179 = vmatpush.msra.mxu0 %v253
    %1180 = vmatpush.msra.mxu0 %v250
    %1181 = vmatpush.msra.mxu0 %v247
    %1182 = vmatpush.msra.mxu0 %v244
    %1183 = vmatpush.msra.mxu0 %v241
    %1184 = vmatpush.msra.mxu0 %v238
    %1185 = vmatpush.msra.mxu0 %v235
    %1186 = vmatpush.msra.mxu0 %v232
    %1187 = vmatmul.f32.gmra.mxu0 %v1129
    %v1188 = vpop.f32.mrf.mxu0
    %v1189 = vadd.f32 %v285, %v1188
    %1190 = vdwg.mxu0
    %v1192 = vrot.slane %v1149, 2
    %v1194 = vadd.f32 %v1125, %v1192
    %v1195 = vxor.u32 %v1194, 2147483648
    %v1196 = vmul.f32 %v1195, 1.442695
    %v1197 = vpow.pop %v1196
    %v1198 = vadd.f32 %v1197, 1.0
    %v1199 = vrcp.pop %v1198
    %v1200 = vmul.f32 %v1198, %v1199
    %v1201 = vsub.f32 1.0, %v1200
    %v1202 = vmul.f32 %v1199, %v1201
    %v1203 = vadd.f32 %v1199, %v1202
    %vm1204 = vweird.f32 %v1198
    %vm1205 = vweird.f32 %v1199
    %vm1206 = vmor %vm1204, %vm1205
    %v1207 = vsel %vm1206, %v1199, %v1203
    %v1208 = vand.u32 2147483647, %v1198
    %vm1209 = vcmp.eq.f32.partialorder %v1208, 8.507059e+37
    %v1210 = vand.u32 %v1198, 2147483648
    %v1211 = vor.u32 1.1754944e-38, %v1210
    %v1212 = vsel %vm1209, %v1211, %v1207
    %v1213 = vmul.f32 1.0, %v1212
    %v1215 = vrot.slane %v1169, 2
    %v1217 = vadd.f32 %v1126, %v1215
    %v1218 = vxor.u32 %v1217, 2147483648
    %v1219 = vmul.f32 %v1218, 1.442695
    %v1220 = vpow.pop %v1219
    %v1221 = vadd.f32 %v1220, 1.0
    %v1222 = vrcp.pop %v1221
    %v1223 = vmul.f32 %v1221, %v1222
    %v1224 = vsub.f32 1.0, %v1223
    %v1225 = vmul.f32 %v1222, %v1224
    %v1226 = vadd.f32 %v1222, %v1225
    %vm1227 = vweird.f32 %v1221
    %vm1228 = vweird.f32 %v1222
    %vm1229 = vmor %vm1227, %vm1228
    %v1230 = vsel %vm1229, %v1222, %v1226
    %v1231 = vand.u32 2147483647, %v1221
    %vm1232 = vcmp.eq.f32.partialorder %v1231, 8.507059e+37
    %v1233 = vand.u32 %v1221, 2147483648
    %v1234 = vor.u32 1.1754944e-38, %v1233
    %v1235 = vsel %vm1232, %v1234, %v1230
    %v1236 = vmul.f32 1.0, %v1235
    %v1238 = vrot.slane %v1189, 2
    %v1240 = vmul.f32 %v1213, %v1238
    %v1241 = vadd.f32 %v1127, %v1240
    %v1242 = vtanh.pop %v1241
    %v1243 = vsub.f32 1.0, %v1236
    %v1244 = vmul.f32 %v1243, %v1242
    %v1245 = vrot.slane %v1124, 6
    %v1247 = vmul.f32 %v1236, %v1245
    %v1248 = vadd.f32 %v1244, %v1247
    %v1249 = vld [vmem:[#allocation2 + $0x30] sm:$0x3]
    %v1250 = vld [vmem:[#allocation2 + $0x38] sm:$0x3]
    %v1251 = vld [vmem:[#allocation2 + $0x40] sm:$0x3]
    %v1253 = vrot.slane %v1248, 6
    %1255 = vmatpush.msra.mxu0 %v275
    %1256 = vmatpush.msra.mxu0 %v272
    %1257 = vmatpush.msra.mxu0 %v269
    %1258 = vmatpush.msra.mxu0 %v266
    %1259 = vmatpush.msra.mxu0 %v263
    %1260 = vmatpush.msra.mxu0 %v260
    %1261 = vmatpush.msra.mxu0 %v257
    %1262 = vmatpush.msra.mxu0 %v254
    %1263 = vmatpush.msra.mxu0 %v251
    %1264 = vmatpush.msra.mxu0 %v248
    %1265 = vmatpush.msra.mxu0 %v245
    %1266 = vmatpush.msra.mxu0 %v242
    %1267 = vmatpush.msra.mxu0 %v239
    %1268 = vmatpush.msra.mxu0 %v236
    %1269 = vmatpush.msra.mxu0 %v233
    %1270 = vmatpush.msra.mxu0 %v230
    %1271 = vmatmul.f32.gmra.mxu0 %v1253
    %v1272 = vpop.f32.mrf.mxu0
    %v1273 = vadd.f32 %v283, %v1272
    %1274 = vdwg.mxu0
    %1275 = vmatpush.msra.mxu0 %v276
    %1276 = vmatpush.msra.mxu0 %v273
    %1277 = vmatpush.msra.mxu0 %v270
    %1278 = vmatpush.msra.mxu0 %v267
    %1279 = vmatpush.msra.mxu0 %v264
    %1280 = vmatpush.msra.mxu0 %v261
    %1281 = vmatpush.msra.mxu0 %v258
    %1282 = vmatpush.msra.mxu0 %v255
    %1283 = vmatpush.msra.mxu0 %v252
    %1284 = vmatpush.msra.mxu0 %v249
    %1285 = vmatpush.msra.mxu0 %v246
    %1286 = vmatpush.msra.mxu0 %v243
    %1287 = vmatpush.msra.mxu0 %v240
    %1288 = vmatpush.msra.mxu0 %v237
    %1289 = vmatpush.msra.mxu0 %v234
    %1290 = vmatpush.msra.mxu0 %v231
    %1291 = vmatmul.f32.gmra.mxu0 %v1253
    %v1292 = vpop.f32.mrf.mxu0
    %v1293 = vadd.f32 %v284, %v1292
    %1294 = vdwg.mxu0
    %1295 = vmatpush.msra.mxu0 %v277
    %1296 = vmatpush.msra.mxu0 %v274
    %1297 = vmatpush.msra.mxu0 %v271
    %1298 = vmatpush.msra.mxu0 %v268
    %1299 = vmatpush.msra.mxu0 %v265
    %1300 = vmatpush.msra.mxu0 %v262
    %1301 = vmatpush.msra.mxu0 %v259
    %1302 = vmatpush.msra.mxu0 %v256
    %1303 = vmatpush.msra.mxu0 %v253
    %1304 = vmatpush.msra.mxu0 %v250
    %1305 = vmatpush.msra.mxu0 %v247
    %1306 = vmatpush.msra.mxu0 %v244
    %1307 = vmatpush.msra.mxu0 %v241
    %1308 = vmatpush.msra.mxu0 %v238
    %1309 = vmatpush.msra.mxu0 %v235
    %1310 = vmatpush.msra.mxu0 %v232
    %1311 = vmatmul.f32.gmra.mxu0 %v1253
    %v1312 = vpop.f32.mrf.mxu0
    %v1313 = vadd.f32 %v285, %v1312
    %1314 = vdwg.mxu0
    %v1315 = vadd.f32 %v1249, %v1273
    %v1316 = vxor.u32 %v1315, 2147483648
    %v1317 = vmul.f32 %v1316, 1.442695
    %v1318 = vpow.pop %v1317
    %v1319 = vadd.f32 %v1318, 1.0
    %v1320 = vrcp.pop %v1319
    %v1321 = vmul.f32 %v1319, %v1320
    %v1322 = vsub.f32 1.0, %v1321
    %v1323 = vmul.f32 %v1320, %v1322
    %v1324 = vadd.f32 %v1320, %v1323
    %vm1325 = vweird.f32 %v1319
    %vm1326 = vweird.f32 %v1320
    %vm1327 = vmor %vm1325, %vm1326
    %v1328 = vsel %vm1327, %v1320, %v1324
    %v1329 = vand.u32 2147483647, %v1319
    %vm1330 = vcmp.eq.f32.partialorder %v1329, 8.507059e+37
    %v1331 = vand.u32 %v1319, 2147483648
    %v1332 = vor.u32 1.1754944e-38, %v1331
    %v1333 = vsel %vm1330, %v1332, %v1328
    %v1334 = vmul.f32 1.0, %v1333
    %v1335 = vadd.f32 %v1250, %v1293
    %v1336 = vxor.u32 %v1335, 2147483648
    %v1337 = vmul.f32 %v1336, 1.442695
    %v1338 = vpow.pop %v1337
    %v1339 = vadd.f32 %v1338, 1.0
    %v1340 = vrcp.pop %v1339
    %v1341 = vmul.f32 %v1339, %v1340
    %v1342 = vsub.f32 1.0, %v1341
    %v1343 = vmul.f32 %v1340, %v1342
    %v1344 = vadd.f32 %v1340, %v1343
    %vm1345 = vweird.f32 %v1339
    %vm1346 = vweird.f32 %v1340
    %vm1347 = vmor %vm1345, %vm1346
    %v1348 = vsel %vm1347, %v1340, %v1344
    %v1349 = vand.u32 2147483647, %v1339
    %vm1350 = vcmp.eq.f32.partialorder %v1349, 8.507059e+37
    %v1351 = vand.u32 %v1339, 2147483648
    %v1352 = vor.u32 1.1754944e-38, %v1351
    %v1353 = vsel %vm1350, %v1352, %v1348
    %v1354 = vmul.f32 1.0, %v1353
    %v1355 = vmul.f32 %v1334, %v1313
    %v1356 = vadd.f32 %v1251, %v1355
    %v1357 = vtanh.pop %v1356
    %v1358 = vsub.f32 1.0, %v1354
    %v1359 = vmul.f32 %v1358, %v1357
    %v1360 = vmul.f32 %v1354, %v1253
    %v1361 = vadd.f32 %v1359, %v1360
    %v1362 = vld [vmem:[#allocation2 + $0x30] sm:$0xc]
    %v1363 = vld [vmem:[#allocation2 + $0x38] sm:$0xc]
    %v1364 = vld [vmem:[#allocation2 + $0x40] sm:$0xc]
    %1365 = vmatpush.msra.mxu0 %v275
    %1366 = vmatpush.msra.mxu0 %v272
    %1367 = vmatpush.msra.mxu0 %v269
    %1368 = vmatpush.msra.mxu0 %v266
    %1369 = vmatpush.msra.mxu0 %v263
    %1370 = vmatpush.msra.mxu0 %v260
    %1371 = vmatpush.msra.mxu0 %v257
    %1372 = vmatpush.msra.mxu0 %v254
    %1373 = vmatpush.msra.mxu0 %v251
    %1374 = vmatpush.msra.mxu0 %v248
    %1375 = vmatpush.msra.mxu0 %v245
    %1376 = vmatpush.msra.mxu0 %v242
    %1377 = vmatpush.msra.mxu0 %v239
    %1378 = vmatpush.msra.mxu0 %v236
    %1379 = vmatpush.msra.mxu0 %v233
    %1380 = vmatpush.msra.mxu0 %v230
    %1381 = vmatmul.f32.gmra.mxu0 %v1361
    %v1382 = vpop.f32.mrf.mxu0
    %v1383 = vadd.f32 %v283, %v1382
    %1384 = vdwg.mxu0
    %1385 = vmatpush.msra.mxu0 %v276
    %1386 = vmatpush.msra.mxu0 %v273
    %1387 = vmatpush.msra.mxu0 %v270
    %1388 = vmatpush.msra.mxu0 %v267
    %1389 = vmatpush.msra.mxu0 %v264
    %1390 = vmatpush.msra.mxu0 %v261
    %1391 = vmatpush.msra.mxu0 %v258
    %1392 = vmatpush.msra.mxu0 %v255
    %1393 = vmatpush.msra.mxu0 %v252
    %1394 = vmatpush.msra.mxu0 %v249
    %1395 = vmatpush.msra.mxu0 %v246
    %1396 = vmatpush.msra.mxu0 %v243
    %1397 = vmatpush.msra.mxu0 %v240
    %1398 = vmatpush.msra.mxu0 %v237
    %1399 = vmatpush.msra.mxu0 %v234
    %1400 = vmatpush.msra.mxu0 %v231
    %1401 = vmatmul.f32.gmra.mxu0 %v1361
    %v1402 = vpop.f32.mrf.mxu0
    %v1403 = vadd.f32 %v284, %v1402
    %1404 = vdwg.mxu0
    %1405 = vmatpush.msra.mxu0 %v277
    %1406 = vmatpush.msra.mxu0 %v274
    %1407 = vmatpush.msra.mxu0 %v271
    %1408 = vmatpush.msra.mxu0 %v268
    %1409 = vmatpush.msra.mxu0 %v265
    %1410 = vmatpush.msra.mxu0 %v262
    %1411 = vmatpush.msra.mxu0 %v259
    %1412 = vmatpush.msra.mxu0 %v256
    %1413 = vmatpush.msra.mxu0 %v253
    %1414 = vmatpush.msra.mxu0 %v250
    %1415 = vmatpush.msra.mxu0 %v247
    %1416 = vmatpush.msra.mxu0 %v244
    %1417 = vmatpush.msra.mxu0 %v241
    %1418 = vmatpush.msra.mxu0 %v238
    %1419 = vmatpush.msra.mxu0 %v235
    %1420 = vmatpush.msra.mxu0 %v232
    %1421 = vmatmul.f32.gmra.mxu0 %v1361
    %v1422 = vpop.f32.mrf.mxu0
    %v1423 = vadd.f32 %v285, %v1422
    %1424 = vdwg.mxu0
    %v1426 = vrot.slane %v1383, 6
    %v1428 = vadd.f32 %v1362, %v1426
    %v1429 = vxor.u32 %v1428, 2147483648
    %v1430 = vmul.f32 %v1429, 1.442695
    %v1431 = vpow.pop %v1430
    %v1432 = vadd.f32 %v1431, 1.0
    %v1433 = vrcp.pop %v1432
    %v1434 = vmul.f32 %v1432, %v1433
    %v1435 = vsub.f32 1.0, %v1434
    %v1436 = vmul.f32 %v1433, %v1435
    %v1437 = vadd.f32 %v1433, %v1436
    %vm1438 = vweird.f32 %v1432
    %vm1439 = vweird.f32 %v1433
    %vm1440 = vmor %vm1438, %vm1439
    %v1441 = vsel %vm1440, %v1433, %v1437
    %v1442 = vand.u32 2147483647, %v1432
    %vm1443 = vcmp.eq.f32.partialorder %v1442, 8.507059e+37
    %v1444 = vand.u32 %v1432, 2147483648
    %v1445 = vor.u32 1.1754944e-38, %v1444
    %v1446 = vsel %vm1443, %v1445, %v1441
    %v1447 = vmul.f32 1.0, %v1446
    %v1449 = vrot.slane %v1403, 6
    %v1451 = vadd.f32 %v1363, %v1449
    %v1452 = vxor.u32 %v1451, 2147483648
    %v1453 = vmul.f32 %v1452, 1.442695
    %v1454 = vpow.pop %v1453
    %v1455 = vadd.f32 %v1454, 1.0
    %v1456 = vrcp.pop %v1455
    %v1457 = vmul.f32 %v1455, %v1456
    %v1458 = vsub.f32 1.0, %v1457
    %v1459 = vmul.f32 %v1456, %v1458
    %v1460 = vadd.f32 %v1456, %v1459
    %vm1461 = vweird.f32 %v1455
    %vm1462 = vweird.f32 %v1456
    %vm1463 = vmor %vm1461, %vm1462
    %v1464 = vsel %vm1463, %v1456, %v1460
    %v1465 = vand.u32 2147483647, %v1455
    %vm1466 = vcmp.eq.f32.partialorder %v1465, 8.507059e+37
    %v1467 = vand.u32 %v1455, 2147483648
    %v1468 = vor.u32 1.1754944e-38, %v1467
    %v1469 = vsel %vm1466, %v1468, %v1464
    %v1470 = vmul.f32 1.0, %v1469
    %v1472 = vrot.slane %v1423, 6
    %v1474 = vmul.f32 %v1447, %v1472
    %v1475 = vadd.f32 %v1364, %v1474
    %v1476 = vtanh.pop %v1475
    %v1477 = vsub.f32 1.0, %v1470
    %v1478 = vmul.f32 %v1477, %v1476
    %v1480 = vrot.slane %v1361, 6
    %v1482 = vmul.f32 %v1470, %v1480
    %v1483 = vadd.f32 %v1478, %v1482
    %v1484 = vld [vmem:[#allocation2 + $0x30] sm:$0x30]
    %v1485 = vld [vmem:[#allocation2 + $0x38] sm:$0x30]
    %v1486 = vld [vmem:[#allocation2 + $0x40] sm:$0x30]
    %v1488 = vrot.slane %v1483, 2
    %1490 = vmatpush.msra.mxu0 %v275
    %1491 = vmatpush.msra.mxu0 %v272
    %1492 = vmatpush.msra.mxu0 %v269
    %1493 = vmatpush.msra.mxu0 %v266
    %1494 = vmatpush.msra.mxu0 %v263
    %1495 = vmatpush.msra.mxu0 %v260
    %1496 = vmatpush.msra.mxu0 %v257
    %1497 = vmatpush.msra.mxu0 %v254
    %1498 = vmatpush.msra.mxu0 %v251
    %1499 = vmatpush.msra.mxu0 %v248
    %1500 = vmatpush.msra.mxu0 %v245
    %1501 = vmatpush.msra.mxu0 %v242
    %1502 = vmatpush.msra.mxu0 %v239
    %1503 = vmatpush.msra.mxu0 %v236
    %1504 = vmatpush.msra.mxu0 %v233
    %1505 = vmatpush.msra.mxu0 %v230
    %1506 = vmatmul.f32.gmra.mxu0 %v1488
    %v1507 = vpop.f32.mrf.mxu0
    %v1508 = vadd.f32 %v283, %v1507
    %1509 = vdwg.mxu0
    %1510 = vmatpush.msra.mxu0 %v276
    %1511 = vmatpush.msra.mxu0 %v273
    %1512 = vmatpush.msra.mxu0 %v270
    %1513 = vmatpush.msra.mxu0 %v267
    %1514 = vmatpush.msra.mxu0 %v264
    %1515 = vmatpush.msra.mxu0 %v261
    %1516 = vmatpush.msra.mxu0 %v258
    %1517 = vmatpush.msra.mxu0 %v255
    %1518 = vmatpush.msra.mxu0 %v252
    %1519 = vmatpush.msra.mxu0 %v249
    %1520 = vmatpush.msra.mxu0 %v246
    %1521 = vmatpush.msra.mxu0 %v243
    %1522 = vmatpush.msra.mxu0 %v240
    %1523 = vmatpush.msra.mxu0 %v237
    %1524 = vmatpush.msra.mxu0 %v234
    %1525 = vmatpush.msra.mxu0 %v231
    %1526 = vmatmul.f32.gmra.mxu0 %v1488
    %v1527 = vpop.f32.mrf.mxu0
    %v1528 = vadd.f32 %v284, %v1527
    %1529 = vdwg.mxu0
    %1530 = vmatpush.msra.mxu0 %v277
    %1531 = vmatpush.msra.mxu0 %v274
    %1532 = vmatpush.msra.mxu0 %v271
    %1533 = vmatpush.msra.mxu0 %v268
    %1534 = vmatpush.msra.mxu0 %v265
    %1535 = vmatpush.msra.mxu0 %v262
    %1536 = vmatpush.msra.mxu0 %v259
    %1537 = vmatpush.msra.mxu0 %v256
    %1538 = vmatpush.msra.mxu0 %v253
    %1539 = vmatpush.msra.mxu0 %v250
    %1540 = vmatpush.msra.mxu0 %v247
    %1541 = vmatpush.msra.mxu0 %v244
    %1542 = vmatpush.msra.mxu0 %v241
    %1543 = vmatpush.msra.mxu0 %v238
    %1544 = vmatpush.msra.mxu0 %v235
    %1545 = vmatpush.msra.mxu0 %v232
    %1546 = vmatmul.f32.gmra.mxu0 %v1488
    %v1547 = vpop.f32.mrf.mxu0
    %v1548 = vadd.f32 %v285, %v1547
    %1549 = vdwg.mxu0
    %v1551 = vrot.slane %v1508, 4
    %v1553 = vadd.f32 %v1484, %v1551
    %v1554 = vxor.u32 %v1553, 2147483648
    %v1555 = vmul.f32 %v1554, 1.442695
    %v1556 = vpow.pop %v1555
    %v1557 = vadd.f32 %v1556, 1.0
    %v1558 = vrcp.pop %v1557
    %v1559 = vmul.f32 %v1557, %v1558
    %v1560 = vsub.f32 1.0, %v1559
    %v1561 = vmul.f32 %v1558, %v1560
    %v1562 = vadd.f32 %v1558, %v1561
    %vm1563 = vweird.f32 %v1557
    %vm1564 = vweird.f32 %v1558
    %vm1565 = vmor %vm1563, %vm1564
    %v1566 = vsel %vm1565, %v1558, %v1562
    %v1567 = vand.u32 2147483647, %v1557
    %vm1568 = vcmp.eq.f32.partialorder %v1567, 8.507059e+37
    %v1569 = vand.u32 %v1557, 2147483648
    %v1570 = vor.u32 1.1754944e-38, %v1569
    %v1571 = vsel %vm1568, %v1570, %v1566
    %v1572 = vmul.f32 1.0, %v1571
    %v1574 = vrot.slane %v1528, 4
    %v1576 = vadd.f32 %v1485, %v1574
    %v1577 = vxor.u32 %v1576, 2147483648
    %v1578 = vmul.f32 %v1577, 1.442695
    %v1579 = vpow.pop %v1578
    %v1580 = vadd.f32 %v1579, 1.0
    %v1581 = vrcp.pop %v1580
    %v1582 = vmul.f32 %v1580, %v1581
    %v1583 = vsub.f32 1.0, %v1582
    %v1584 = vmul.f32 %v1581, %v1583
    %v1585 = vadd.f32 %v1581, %v1584
    %vm1586 = vweird.f32 %v1580
    %vm1587 = vweird.f32 %v1581
    %vm1588 = vmor %vm1586, %vm1587
    %v1589 = vsel %vm1588, %v1581, %v1585
    %v1590 = vand.u32 2147483647, %v1580
    %vm1591 = vcmp.eq.f32.partialorder %v1590, 8.507059e+37
    %v1592 = vand.u32 %v1580, 2147483648
    %v1593 = vor.u32 1.1754944e-38, %v1592
    %v1594 = vsel %vm1591, %v1593, %v1589
    %v1595 = vmul.f32 1.0, %v1594
    %v1597 = vrot.slane %v1548, 4
    %v1599 = vmul.f32 %v1572, %v1597
    %v1600 = vadd.f32 %v1486, %v1599
    %v1601 = vtanh.pop %v1600
    %v1602 = vsub.f32 1.0, %v1595
    %v1603 = vmul.f32 %v1602, %v1601
    %v1604 = vrot.slane %v1483, 6
    %v1606 = vmul.f32 %v1595, %v1604
    %v1607 = vadd.f32 %v1603, %v1606
    %v1608 = vld [vmem:[#allocation2 + $0x30] sm:$0xc0]
    %v1609 = vld [vmem:[#allocation2 + $0x38] sm:$0xc0]
    %v1610 = vld [vmem:[#allocation2 + $0x40] sm:$0xc0]
    %v1612 = vrot.slane %v1607, 4
    %1614 = vmatpush.msra.mxu0 %v275
    %1615 = vmatpush.msra.mxu0 %v272
    %1616 = vmatpush.msra.mxu0 %v269
    %1617 = vmatpush.msra.mxu0 %v266
    %1618 = vmatpush.msra.mxu0 %v263
    %1619 = vmatpush.msra.mxu0 %v260
    %1620 = vmatpush.msra.mxu0 %v257
    %1621 = vmatpush.msra.mxu0 %v254
    %1622 = vmatpush.msra.mxu0 %v251
    %1623 = vmatpush.msra.mxu0 %v248
    %1624 = vmatpush.msra.mxu0 %v245
    %1625 = vmatpush.msra.mxu0 %v242
    %1626 = vmatpush.msra.mxu0 %v239
    %1627 = vmatpush.msra.mxu0 %v236
    %1628 = vmatpush.msra.mxu0 %v233
    %1629 = vmatpush.msra.mxu0 %v230
    %1630 = vmatmul.f32.gmra.mxu0 %v1612
    %v1631 = vpop.f32.mrf.mxu0
    %v1632 = vadd.f32 %v283, %v1631
    %1633 = vdwg.mxu0
    %1634 = vmatpush.msra.mxu0 %v276
    %1635 = vmatpush.msra.mxu0 %v273
    %1636 = vmatpush.msra.mxu0 %v270
    %1637 = vmatpush.msra.mxu0 %v267
    %1638 = vmatpush.msra.mxu0 %v264
    %1639 = vmatpush.msra.mxu0 %v261
    %1640 = vmatpush.msra.mxu0 %v258
    %1641 = vmatpush.msra.mxu0 %v255
    %1642 = vmatpush.msra.mxu0 %v252
    %1643 = vmatpush.msra.mxu0 %v249
    %1644 = vmatpush.msra.mxu0 %v246
    %1645 = vmatpush.msra.mxu0 %v243
    %1646 = vmatpush.msra.mxu0 %v240
    %1647 = vmatpush.msra.mxu0 %v237
    %1648 = vmatpush.msra.mxu0 %v234
    %1649 = vmatpush.msra.mxu0 %v231
    %1650 = vmatmul.f32.gmra.mxu0 %v1612
    %v1651 = vpop.f32.mrf.mxu0
    %v1652 = vadd.f32 %v284, %v1651
    %1653 = vdwg.mxu0
    %1654 = vmatpush.msra.mxu0 %v277
    %1655 = vmatpush.msra.mxu0 %v274
    %1656 = vmatpush.msra.mxu0 %v271
    %1657 = vmatpush.msra.mxu0 %v268
    %1658 = vmatpush.msra.mxu0 %v265
    %1659 = vmatpush.msra.mxu0 %v262
    %1660 = vmatpush.msra.mxu0 %v259
    %1661 = vmatpush.msra.mxu0 %v256
    %1662 = vmatpush.msra.mxu0 %v253
    %1663 = vmatpush.msra.mxu0 %v250
    %1664 = vmatpush.msra.mxu0 %v247
    %1665 = vmatpush.msra.mxu0 %v244
    %1666 = vmatpush.msra.mxu0 %v241
    %1667 = vmatpush.msra.mxu0 %v238
    %1668 = vmatpush.msra.mxu0 %v235
    %1669 = vmatpush.msra.mxu0 %v232
    %1670 = vmatmul.f32.gmra.mxu0 %v1612
    %v1671 = vpop.f32.mrf.mxu0
    %v1672 = vadd.f32 %v285, %v1671
    %1673 = vdwg.mxu0
    %v1675 = vrot.slane %v1632, 2
    %v1677 = vadd.f32 %v1608, %v1675
    %v1678 = vxor.u32 %v1677, 2147483648
    %v1679 = vmul.f32 %v1678, 1.442695
    %v1680 = vpow.pop %v1679
    %v1681 = vadd.f32 %v1680, 1.0
    %v1682 = vrcp.pop %v1681
    %v1683 = vmul.f32 %v1681, %v1682
    %v1684 = vsub.f32 1.0, %v1683
    %v1685 = vmul.f32 %v1682, %v1684
    %v1686 = vadd.f32 %v1682, %v1685
    %vm1687 = vweird.f32 %v1681
    %vm1688 = vweird.f32 %v1682
    %vm1689 = vmor %vm1687, %vm1688
    %v1690 = vsel %vm1689, %v1682, %v1686
    %v1691 = vand.u32 2147483647, %v1681
    %vm1692 = vcmp.eq.f32.partialorder %v1691, 8.507059e+37
    %v1693 = vand.u32 %v1681, 2147483648
    %v1694 = vor.u32 1.1754944e-38, %v1693
    %v1695 = vsel %vm1692, %v1694, %v1690
    %v1696 = vmul.f32 1.0, %v1695
    %v1698 = vrot.slane %v1652, 2
    %v1700 = vadd.f32 %v1609, %v1698
    %v1701 = vxor.u32 %v1700, 2147483648
    %v1702 = vmul.f32 %v1701, 1.442695
    %v1703 = vpow.pop %v1702
    %v1704 = vadd.f32 %v1703, 1.0
    %v1705 = vrcp.pop %v1704
    %v1706 = vmul.f32 %v1704, %v1705
    %v1707 = vsub.f32 1.0, %v1706
    %v1708 = vmul.f32 %v1705, %v1707
    %v1709 = vadd.f32 %v1705, %v1708
    %vm1710 = vweird.f32 %v1704
    %vm1711 = vweird.f32 %v1705
    %vm1712 = vmor %vm1710, %vm1711
    %v1713 = vsel %vm1712, %v1705, %v1709
    %v1714 = vand.u32 2147483647, %v1704
    %vm1715 = vcmp.eq.f32.partialorder %v1714, 8.507059e+37
    %v1716 = vand.u32 %v1704, 2147483648
    %v1717 = vor.u32 1.1754944e-38, %v1716
    %v1718 = vsel %vm1715, %v1717, %v1713
    %v1719 = vmul.f32 1.0, %v1718
    %v1721 = vrot.slane %v1672, 2
    %v1723 = vmul.f32 %v1696, %v1721
    %v1724 = vadd.f32 %v1610, %v1723
    %v1725 = vtanh.pop %v1724
    %v1726 = vsub.f32 1.0, %v1719
    %v1727 = vmul.f32 %v1726, %v1725
    %v1728 = vrot.slane %v1607, 6
    %v1730 = vmul.f32 %v1719, %v1728
    %v1731 = vadd.f32 %v1727, %v1730
    %v1732 = vld [vmem:[#allocation2 + $0x48] sm:$0x3]
    %v1733 = vld [vmem:[#allocation2 + $0x50] sm:$0x3]
    %v1734 = vld [vmem:[#allocation2 + $0x58] sm:$0x3]
    %v1736 = vrot.slane %v1731, 6
    %1738 = vmatpush.msra.mxu0 %v275
    %1739 = vmatpush.msra.mxu0 %v272
    %1740 = vmatpush.msra.mxu0 %v269
    %1741 = vmatpush.msra.mxu0 %v266
    %1742 = vmatpush.msra.mxu0 %v263
    %1743 = vmatpush.msra.mxu0 %v260
    %1744 = vmatpush.msra.mxu0 %v257
    %1745 = vmatpush.msra.mxu0 %v254
    %1746 = vmatpush.msra.mxu0 %v251
    %1747 = vmatpush.msra.mxu0 %v248
    %1748 = vmatpush.msra.mxu0 %v245
    %1749 = vmatpush.msra.mxu0 %v242
    %1750 = vmatpush.msra.mxu0 %v239
    %1751 = vmatpush.msra.mxu0 %v236
    %1752 = vmatpush.msra.mxu0 %v233
    %1753 = vmatpush.msra.mxu0 %v230
    %1754 = vmatmul.f32.gmra.mxu0 %v1736
    %v1755 = vpop.f32.mrf.mxu0
    %v1756 = vadd.f32 %v283, %v1755
    %1757 = vdwg.mxu0
    %1758 = vmatpush.msra.mxu0 %v276
    %1759 = vmatpush.msra.mxu0 %v273
    %1760 = vmatpush.msra.mxu0 %v270
    %1761 = vmatpush.msra.mxu0 %v267
    %1762 = vmatpush.msra.mxu0 %v264
    %1763 = vmatpush.msra.mxu0 %v261
    %1764 = vmatpush.msra.mxu0 %v258
    %1765 = vmatpush.msra.mxu0 %v255
    %1766 = vmatpush.msra.mxu0 %v252
    %1767 = vmatpush.msra.mxu0 %v249
    %1768 = vmatpush.msra.mxu0 %v246
    %1769 = vmatpush.msra.mxu0 %v243
    %1770 = vmatpush.msra.mxu0 %v240
    %1771 = vmatpush.msra.mxu0 %v237
    %1772 = vmatpush.msra.mxu0 %v234
    %1773 = vmatpush.msra.mxu0 %v231
    %1774 = vmatmul.f32.gmra.mxu0 %v1736
    %v1775 = vpop.f32.mrf.mxu0
    %v1776 = vadd.f32 %v284, %v1775
    %1777 = vdwg.mxu0
    %1778 = vmatpush.msra.mxu0 %v277
    %1779 = vmatpush.msra.mxu0 %v274
    %1780 = vmatpush.msra.mxu0 %v271
    %1781 = vmatpush.msra.mxu0 %v268
    %1782 = vmatpush.msra.mxu0 %v265
    %1783 = vmatpush.msra.mxu0 %v262
    %1784 = vmatpush.msra.mxu0 %v259
    %1785 = vmatpush.msra.mxu0 %v256
    %1786 = vmatpush.msra.mxu0 %v253
    %1787 = vmatpush.msra.mxu0 %v250
    %1788 = vmatpush.msra.mxu0 %v247
    %1789 = vmatpush.msra.mxu0 %v244
    %1790 = vmatpush.msra.mxu0 %v241
    %1791 = vmatpush.msra.mxu0 %v238
    %1792 = vmatpush.msra.mxu0 %v235
    %1793 = vmatpush.msra.mxu0 %v232
    %1794 = vmatmul.f32.gmra.mxu0 %v1736
    %v1795 = vpop.f32.mrf.mxu0
    %v1796 = vadd.f32 %v285, %v1795
    %1797 = vdwg.mxu0
    %v1798 = vadd.f32 %v1732, %v1756
    %v1799 = vxor.u32 %v1798, 2147483648
    %v1800 = vmul.f32 %v1799, 1.442695
    %v1801 = vpow.pop %v1800
    %v1802 = vadd.f32 %v1801, 1.0
    %v1803 = vrcp.pop %v1802
    %v1804 = vmul.f32 %v1802, %v1803
    %v1805 = vsub.f32 1.0, %v1804
    %v1806 = vmul.f32 %v1803, %v1805
    %v1807 = vadd.f32 %v1803, %v1806
    %vm1808 = vweird.f32 %v1802
    %vm1809 = vweird.f32 %v1803
    %vm1810 = vmor %vm1808, %vm1809
    %v1811 = vsel %vm1810, %v1803, %v1807
    %v1812 = vand.u32 2147483647, %v1802
    %vm1813 = vcmp.eq.f32.partialorder %v1812, 8.507059e+37
    %v1814 = vand.u32 %v1802, 2147483648
    %v1815 = vor.u32 1.1754944e-38, %v1814
    %v1816 = vsel %vm1813, %v1815, %v1811
    %v1817 = vmul.f32 1.0, %v1816
    %v1818 = vadd.f32 %v1733, %v1776
    %v1819 = vxor.u32 %v1818, 2147483648
    %v1820 = vmul.f32 %v1819, 1.442695
    %v1821 = vpow.pop %v1820
    %v1822 = vadd.f32 %v1821, 1.0
    %v1823 = vrcp.pop %v1822
    %v1824 = vmul.f32 %v1822, %v1823
    %v1825 = vsub.f32 1.0, %v1824
    %v1826 = vmul.f32 %v1823, %v1825
    %v1827 = vadd.f32 %v1823, %v1826
    %vm1828 = vweird.f32 %v1822
    %vm1829 = vweird.f32 %v1823
    %vm1830 = vmor %vm1828, %vm1829
    %v1831 = vsel %vm1830, %v1823, %v1827
    %v1832 = vand.u32 2147483647, %v1822
    %vm1833 = vcmp.eq.f32.partialorder %v1832, 8.507059e+37
    %v1834 = vand.u32 %v1822, 2147483648
    %v1835 = vor.u32 1.1754944e-38, %v1834
    %v1836 = vsel %vm1833, %v1835, %v1831
    %v1837 = vmul.f32 1.0, %v1836
    %v1838 = vmul.f32 %v1817, %v1796
    %v1839 = vadd.f32 %v1734, %v1838
    %v1840 = vtanh.pop %v1839
    %v1841 = vsub.f32 1.0, %v1837
    %v1842 = vmul.f32 %v1841, %v1840
    %v1843 = vmul.f32 %v1837, %v1736
    %v1844 = vadd.f32 %v1842, %v1843
    %v1845 = vld [vmem:[#allocation2 + $0x48] sm:$0xc]
    %v1846 = vld [vmem:[#allocation2 + $0x50] sm:$0xc]
    %v1847 = vld [vmem:[#allocation2 + $0x58] sm:$0xc]
    %1848 = vmatpush.msra.mxu0 %v275
    %1849 = vmatpush.msra.mxu0 %v272
    %1850 = vmatpush.msra.mxu0 %v269
    %1851 = vmatpush.msra.mxu0 %v266
    %1852 = vmatpush.msra.mxu0 %v263
    %1853 = vmatpush.msra.mxu0 %v260
    %1854 = vmatpush.msra.mxu0 %v257
    %1855 = vmatpush.msra.mxu0 %v254
    %1856 = vmatpush.msra.mxu0 %v251
    %1857 = vmatpush.msra.mxu0 %v248
    %1858 = vmatpush.msra.mxu0 %v245
    %1859 = vmatpush.msra.mxu0 %v242
    %1860 = vmatpush.msra.mxu0 %v239
    %1861 = vmatpush.msra.mxu0 %v236
    %1862 = vmatpush.msra.mxu0 %v233
    %1863 = vmatpush.msra.mxu0 %v230
    %1864 = vmatmul.f32.gmra.mxu0 %v1844
    %v1865 = vpop.f32.mrf.mxu0
    %v1866 = vadd.f32 %v283, %v1865
    %1867 = vdwg.mxu0
    %1868 = vmatpush.msra.mxu0 %v276
    %1869 = vmatpush.msra.mxu0 %v273
    %1870 = vmatpush.msra.mxu0 %v270
    %1871 = vmatpush.msra.mxu0 %v267
    %1872 = vmatpush.msra.mxu0 %v264
    %1873 = vmatpush.msra.mxu0 %v261
    %1874 = vmatpush.msra.mxu0 %v258
    %1875 = vmatpush.msra.mxu0 %v255
    %1876 = vmatpush.msra.mxu0 %v252
    %1877 = vmatpush.msra.mxu0 %v249
    %1878 = vmatpush.msra.mxu0 %v246
    %1879 = vmatpush.msra.mxu0 %v243
    %1880 = vmatpush.msra.mxu0 %v240
    %1881 = vmatpush.msra.mxu0 %v237
    %1882 = vmatpush.msra.mxu0 %v234
    %1883 = vmatpush.msra.mxu0 %v231
    %1884 = vmatmul.f32.gmra.mxu0 %v1844
    %v1885 = vpop.f32.mrf.mxu0
    %v1886 = vadd.f32 %v284, %v1885
    %1887 = vdwg.mxu0
    %1888 = vmatpush.msra.mxu0 %v277
    %1889 = vmatpush.msra.mxu0 %v274
    %1890 = vmatpush.msra.mxu0 %v271
    %1891 = vmatpush.msra.mxu0 %v268
    %1892 = vmatpush.msra.mxu0 %v265
    %1893 = vmatpush.msra.mxu0 %v262
    %1894 = vmatpush.msra.mxu0 %v259
    %1895 = vmatpush.msra.mxu0 %v256
    %1896 = vmatpush.msra.mxu0 %v253
    %1897 = vmatpush.msra.mxu0 %v250
    %1898 = vmatpush.msra.mxu0 %v247
    %1899 = vmatpush.msra.mxu0 %v244
    %1900 = vmatpush.msra.mxu0 %v241
    %1901 = vmatpush.msra.mxu0 %v238
    %1902 = vmatpush.msra.mxu0 %v235
    %1903 = vmatpush.msra.mxu0 %v232
    %1904 = vmatmul.f32.gmra.mxu0 %v1844
    %v1905 = vpop.f32.mrf.mxu0
    %v1906 = vadd.f32 %v285, %v1905
    %1907 = vdwg.mxu0
    %v1909 = vrot.slane %v1866, 6
    %v1911 = vadd.f32 %v1845, %v1909
    %v1912 = vxor.u32 %v1911, 2147483648
    %v1913 = vmul.f32 %v1912, 1.442695
    %v1914 = vpow.pop %v1913
    %v1915 = vadd.f32 %v1914, 1.0
    %v1916 = vrcp.pop %v1915
    %v1917 = vmul.f32 %v1915, %v1916
    %v1918 = vsub.f32 1.0, %v1917
    %v1919 = vmul.f32 %v1916, %v1918
    %v1920 = vadd.f32 %v1916, %v1919
    %vm1921 = vweird.f32 %v1915
    %vm1922 = vweird.f32 %v1916
    %vm1923 = vmor %vm1921, %vm1922
    %v1924 = vsel %vm1923, %v1916, %v1920
    %v1925 = vand.u32 2147483647, %v1915
    %vm1926 = vcmp.eq.f32.partialorder %v1925, 8.507059e+37
    %v1927 = vand.u32 %v1915, 2147483648
    %v1928 = vor.u32 1.1754944e-38, %v1927
    %v1929 = vsel %vm1926, %v1928, %v1924
    %v1930 = vmul.f32 1.0, %v1929
    %v1932 = vrot.slane %v1886, 6
    %v1934 = vadd.f32 %v1846, %v1932
    %v1935 = vxor.u32 %v1934, 2147483648
    %v1936 = vmul.f32 %v1935, 1.442695
    %v1937 = vpow.pop %v1936
    %v1938 = vadd.f32 %v1937, 1.0
    %v1939 = vrcp.pop %v1938
    %v1940 = vmul.f32 %v1938, %v1939
    %v1941 = vsub.f32 1.0, %v1940
    %v1942 = vmul.f32 %v1939, %v1941
    %v1943 = vadd.f32 %v1939, %v1942
    %vm1944 = vweird.f32 %v1938
    %vm1945 = vweird.f32 %v1939
    %vm1946 = vmor %vm1944, %vm1945
    %v1947 = vsel %vm1946, %v1939, %v1943
    %v1948 = vand.u32 2147483647, %v1938
    %vm1949 = vcmp.eq.f32.partialorder %v1948, 8.507059e+37
    %v1950 = vand.u32 %v1938, 2147483648
    %v1951 = vor.u32 1.1754944e-38, %v1950
    %v1952 = vsel %vm1949, %v1951, %v1947
    %v1953 = vmul.f32 1.0, %v1952
    %v1955 = vrot.slane %v1906, 6
    %v1957 = vmul.f32 %v1930, %v1955
    %v1958 = vadd.f32 %v1847, %v1957
    %v1959 = vtanh.pop %v1958
    %v1960 = vsub.f32 1.0, %v1953
    %v1961 = vmul.f32 %v1960, %v1959
    %v1963 = vrot.slane %v1844, 6
    %v1965 = vmul.f32 %v1953, %v1963
    %v1966 = vadd.f32 %v1961, %v1965
    %1967 = vst [vmem:[#allocation11 - $0x2] sm:$0xc] %v1966
    // Predicated region
    $region38: #{tpu_custom_call.1} parent=1 // pred_check
      _
    $region39: #{tpu_custom_call.1} parent=1 // pred_check_branch
      %1969 = sbr.rel (0) target = $region41
    $region40: #{tpu_custom_call.1} parent=1 // pred_region
      %1971 = vsyncadd [#allocation5], 0
      %s1973 = sshll.u32 [#allocation11], 4
      %s1974 = int_to_ptr.vmem [resolvable:$true] %s1973
      %s1975 = sshll.u32 %s5, 4
      %s1976 = int_to_ptr.hbm [resolvable:$true] %s1975
      %1978 = dma.vmem_to_hbm [thread:$0]  %s1974, 32, %s1976, [#allocation5]
    $region41: #{tpu_custom_call.1} parent=1 // pred_fallthru
      _
    // Predicated region
    $region42: #{tpu_custom_call.1} parent=1 // pred_check
      _
    $region43: #{tpu_custom_call.1} parent=1 // pred_check_branch
      %1980 = sbr.rel (0) target = $region45
    $region44: #{tpu_custom_call.1} parent=1 // pred_region
      %1982 = dma.done [#allocation5], 32
    $region45: #{tpu_custom_call.1} parent=1 // pred_fallthru
      _
    %1983 = vsyncpa [#allocation4], 1
    %1984 = vsyncpa [#allocation7], 1
    %1985 = vsyncpa [#allocation10], 1
    %1986 = vsyncpa [#allocation5], 1

</llo_original>
